<compile_context>
chip_gen: v5e
topology: v5e:2x2
jax: 0.10.0
libtpu: 0.0.40
codegen_flags: <defaults>
</compile_context>

<pallas_src>
from functools import partial

import jax
import jax.numpy as jnp
from jax import lax
from jax.experimental import pallas as pl
from jax.experimental.pallas import tpu as pltpu


# ----------------------------------------------------------------------------
# Fused Pallas kernel (all LSTM layers + FC head)
# ----------------------------------------------------------------------------
def _make_rnn_kernel(num_layers, T, Bp, H):
    """Builds the fused kernel body for static (num_layers, T, Bp, H)."""
    FourH = 4 * H

    def kernel(*refs):
        # refs = [x] + [wih, whh, bias]*L + [wfc, bfc] + [out] + [gx_sc, hseq_sc]
        x_ref = refs[0]
        w_refs = refs[1:1 + 3 * num_layers]
        wfc_ref = refs[1 + 3 * num_layers]
        bfc_ref = refs[2 + 3 * num_layers]
        out_ref = refs[3 + 3 * num_layers]
        gx_sc = refs[4 + 3 * num_layers]      # (T, Bp, 4H) f32 scratch
        hseq_sc = refs[5 + 3 * num_layers]    # (T, Bp, H)  f32 scratch

        h_last = None
        for layer in range(num_layers):
            wih = w_refs[3 * layer][...]          # (D_in, 4H) bf16
            whh = w_refs[3 * layer + 1][...]      # (H,    4H) bf16
            bias = w_refs[3 * layer + 2][...]     # (1,    4H) f32

            if layer == 0:
                inp = x_ref[...]                                      # (T*Bp, D) bf16
            else:
                inp = hseq_sc[...].reshape(T * Bp, H).astype(jnp.bfloat16)

            # Input projection + folded bias for ALL timesteps: one MXU matmul.
            gx = jnp.dot(inp, wih, preferred_element_type=jnp.float32) + bias
            gx_sc[...] = gx.reshape(T, Bp, FourH)

            last_layer = layer == num_layers - 1

            def step(t, carry, whh=whh, last_layer=last_layer):
                h, c = carry                                          # f32 (Bp, H)
                gates = gx_sc[t] + jnp.dot(h.astype(jnp.bfloat16), whh,
                                           preferred_element_type=jnp.float32)
                # Reordered gate layout: [i | f | o | g]
                sig = jax.nn.sigmoid(gates[:, :3 * H])   # one EUP pass (i, f, o)
                g_g = jnp.tanh(gates[:, 3 * H:])         # one EUP pass (g)
                i_g = sig[:, :H]
                f_g = sig[:, H:2 * H]
                o_g = sig[:, 2 * H:3 * H]
                c_new = f_g * c + i_g * g_g
                h_new = o_g * jnp.tanh(c_new)
                if not last_layer:
                    hseq_sc[t] = h_new                   # feeds next layer's projection
                return h_new, c_new

            init = (jnp.zeros((Bp, H), jnp.float32),
                    jnp.zeros((Bp, H), jnp.float32))
            h_last, _ = lax.fori_loop(0, T, step, init, unroll=True)

        # FC head on the last timestep's hidden state of the last layer
        # (== out[:, -1, :] of the PyTorch module). Output is lane-dense
        # (classes padded to 128 columns; sliced in the wrapper).
        out_ref[...] = (jnp.dot(h_last.astype(jnp.bfloat16), wfc_ref[...],
                                preferred_element_type=jnp.float32)
                        + bfc_ref[...])

    return kernel


# ----------------------------------------------------------------------------
# Param prep (hoisted out of the forward)
# ----------------------------------------------------------------------------
def _reorder_gates(w):
    """Reorder last-dim gate blocks from PyTorch (i, f, g, o) to (i, f, o, g)."""
    i, f, g, o = jnp.split(w, 4, axis=-1)
    return jnp.concatenate([i, f, o, g], axis=-1)


def prepare_params(params_flat):
    """Transpose weights, fold & reorder biases, cast MXU operands to bf16,
    pad FC head columns to a lane-dense 128 multiple."""
    lstm_params, (w_fc, b_fc) = params_flat
    layers = []
    for (w_ih, w_hh, b_ih, b_hh) in lstm_params:
        wih_t = _reorder_gates(jnp.transpose(w_ih)).astype(jnp.bfloat16)   # (D_in, 4H)
        whh_t = _reorder_gates(jnp.transpose(w_hh)).astype(jnp.bfloat16)   # (H,    4H)
        bias = _reorder_gates((b_ih + b_hh)[None, :]).astype(jnp.float32)  # (1,    4H)
        layers.append((wih_t, whh_t, bias))

    C, H = w_fc.shape
    Cpad = max(128, ((C + 127) // 128) * 128)
    wfc_t = jnp.zeros((H, Cpad), jnp.float32).at[:, :C].set(jnp.transpose(w_fc))
    bfc_p = jnp.zeros((1, Cpad), jnp.float32).at[:, :C].set(b_fc[None, :])
    return tuple(layers), (wfc_t.astype(jnp.bfloat16), bfc_p)


# ----------------------------------------------------------------------------
# Forward wrapper
# ----------------------------------------------------------------------------
@partial(jax.jit, static_argnames=("num_classes",))
def rnn_forward(x, prepared, *, num_classes):
    """x: (B, T, input_size) batch_first, like the PyTorch module."""
    layers, (wfc_t, bfc_p) = prepared
    B, T, D = x.shape
    num_layers = len(layers)
    H = layers[0][1].shape[0]
    Cpad = wfc_t.shape[1]
    Bp = ((B + 7) // 8) * 8          # pad batch to a sublane multiple

    # Time-major, batch padded, flattened to (T*Bp, D); bf16 MXU operand.
    x_t = jnp.transpose(x, (1, 0, 2))                        # (T, B, D)
    if Bp != B:
        x_t = jnp.pad(x_t, ((0, 0), (0, Bp - B), (0, 0)))
    x_flat = x_t.reshape(T * Bp, D).astype(jnp.bfloat16)

    flat_inputs = [x_flat]
    in_specs = [pl.BlockSpec((T * Bp, D), lambda i: (0, 0))]
    for (wih_t, whh_t, bias) in layers:
        flat_inputs += [wih_t, whh_t, bias]
        in_specs += [
            pl.BlockSpec(wih_t.shape, lambda i: (0, 0)),
            pl.BlockSpec(whh_t.shape, lambda i: (0, 0)),
            pl.BlockSpec(bias.shape, lambda i: (0, 0)),
        ]
    flat_inputs += [wfc_t, bfc_p]
    in_specs += [
        pl.BlockSpec(wfc_t.shape, lambda i: (0, 0)),
        pl.BlockSpec(bfc_p.shape, lambda i: (0, 0)),
    ]

    # VMEM budget from the actual footprint (x2 for any double-buffered spec).
    vmem_bytes = sum(int(a.size) * int(a.dtype.itemsize) for a in flat_inputs)
    vmem_bytes += Bp * Cpad * 4                                # output
    vmem_bytes += T * Bp * 4 * H * 4 + T * Bp * H * 4          # scratch (gx, hseq)
    vmem_limit = int(min(100 * (1 << 20),
                         max(32 * (1 << 20), 2 * vmem_bytes + (4 << 20))))

    out_padded = pl.pallas_call(
        _make_rnn_kernel(num_layers, T, Bp, H),
        out_shape=jax.ShapeDtypeStruct((Bp, Cpad), jnp.float32),
        grid_spec=pltpu.PrefetchScalarGridSpec(
            num_scalar_prefetch=0,
            grid=(1,),                                   # recurrence lives in-kernel
            in_specs=in_specs,
            out_specs=pl.BlockSpec((Bp, Cpad), lambda i: (0, 0)),
            scratch_shapes=[
                pltpu.VMEM((T, Bp, 4 * H), jnp.float32),  # gx (all timesteps)
                pltpu.VMEM((T, Bp, H), jnp.float32),      # inter-layer hidden seq
            ],
        ),
        compiler_params=pltpu.CompilerParams(
            dimension_semantics=("arbitrary",),
            vmem_limit_bytes=vmem_limit),
    )(*flat_inputs)

    return out_padded[:B, :num_classes]


# ----------------------------------------------------------------------------
# Init + pure-JAX reference (for correctness check)
# ----------------------------------------------------------------------------
def init_params(key, input_size, hidden_size, num_layers, num_classes):
    """Deterministic init mirroring PyTorch shapes (uniform +-1/sqrt(H))."""
    k = 1.0 / jnp.sqrt(hidden_size)
    params = {"lstm": [], "fc": None}
    for layer in range(num_layers):
        d_in = input_size if layer == 0 else hidden_size
        key, k1, k2, k3, k4 = jax.random.split(key, 5)
        w_ih = jax.random.uniform(k1, (4 * hidden_size, d_in), jnp.float32, -k, k)
        w_hh = jax.random.uniform(k2, (4 * hidden_size, hidden_size), jnp.float32, -k, k)
        b_ih = jax.random.uniform(k3, (4 * hidden_size,), jnp.float32, -k, k)
        b_hh = jax.random.uniform(k4, (4 * hidden_size,), jnp.float32, -k, k)
        params["lstm"].append((w_ih, w_hh, b_ih, b_hh))
    key, k1, k2 = jax.random.split(key, 3)
    kf = 1.0 / jnp.sqrt(hidden_size)
    w_fc = jax.random.uniform(k1, (num_classes, hidden_size), jnp.float32, -kf, kf)
    b_fc = jax.random.uniform(k2, (num_classes,), jnp.float32, -kf, kf)
    params["fc"] = (w_fc, b_fc)
    return params


def rnn_reference(x, params_flat):
    lstm_params, (w_fc, b_fc) = params_flat
    B = x.shape[0]
    seq = x
    for (w_ih, w_hh, b_ih, b_hh) in lstm_params:
        H = w_hh.shape[1]
        h = jnp.zeros((B, H), jnp.float32)
        c = jnp.zeros((B, H), jnp.float32)

        def step(carry, x_t):
            h, c = carry
            gates = x_t @ w_ih.T + b_ih + h @ w_hh.T + b_hh
            i_g = jax.nn.sigmoid(gates[:, 0 * H:1 * H])
            f_g = jax.nn.sigmoid(gates[:, 1 * H:2 * H])
            g_g = jnp.tanh(gates[:, 2 * H:3 * H])
            o_g = jax.nn.sigmoid(gates[:, 3 * H:4 * H])
            c_new = f_g * c + i_g * g_g
            h_new = o_g * jnp.tanh(c_new)
            return (h_new, c_new), h_new

        (_, _), hs = jax.lax.scan(step, (h, c), jnp.transpose(seq, (1, 0, 2)))
        seq = jnp.transpose(hs, (1, 0, 2))
    return seq[:, -1, :] @ w_fc.T + b_fc


# ----------------------------------------------------------------------------
if __name__ == "__main__":
    # Small shapes consistent with the module's forward pass.
    batch, seq_len = 2, 8
    input_size, hidden_size, num_layers, num_classes = 32, 32, 2, 10

    key = jax.random.PRNGKey(0)
    key, kx, kp = jax.random.split(key, 3)
    x = jax.random.normal(kx, (batch, seq_len, input_size), jnp.float32)

    p = init_params(kp, input_size, hidden_size, num_layers, num_classes)
    params_flat = (tuple(p["lstm"]), p["fc"])
    prepared = prepare_params(params_flat)   # one-time transpose/reorder/bf16/pad

    out = rnn_forward(x, prepared, num_classes=num_classes)
    out = jax.block_until_ready(out)

    ref = rnn_reference(x, params_flat)
    assert out.shape == (batch, num_classes)
    # bf16 MXU operands (f32 accumulation, f32 cell state) -> slightly looser
    # tolerance vs the pure-f32 reference.
    assert jnp.allclose(out, ref, atol=5e-2, rtol=5e-2), "mismatch vs reference"

    print("KERNEL_OK")
</pallas_src>

<mosaic_0001>
module attributes {stable_mosaic.version = 11 : i64} {
  func.func @kernel(%arg0: i32, %arg1: memref<64x32xbf16, #tpu.memory_space<vmem>>, %arg2: memref<32x128xbf16, #tpu.memory_space<vmem>>, %arg3: memref<32x128xbf16, #tpu.memory_space<vmem>>, %arg4: memref<1x128xf32, #tpu.memory_space<vmem>>, %arg5: memref<32x128xbf16, #tpu.memory_space<vmem>>, %arg6: memref<32x128xbf16, #tpu.memory_space<vmem>>, %arg7: memref<1x128xf32, #tpu.memory_space<vmem>>, %arg8: memref<32x128xbf16, #tpu.memory_space<vmem>>, %arg9: memref<1x128xf32, #tpu.memory_space<vmem>>, %arg10: memref<8x128xf32, #tpu.memory_space<vmem>>, %arg11: memref<8x8x128xf32, #tpu.memory_space<vmem>>, %arg12: memref<8x8x32xf32, #tpu.memory_space<vmem>>) attributes {dimension_semantics = [#tpu.dimension_semantics<arbitrary>], iteration_bounds = array<i64: 1>, scalar_prefetch = 0 : i64, scratch_operands = 2 : i64, tpu.core_type = #tpu.core_type<tc>, window_params = [{pipeline_mode = #tpu.pipeline_mode<synchronous>, transform_indices = @transform_0, window_bounds = array<i64: 64, 32>}, {pipeline_mode = #tpu.pipeline_mode<synchronous>, transform_indices = @transform_1, window_bounds = array<i64: 32, 128>}, {pipeline_mode = #tpu.pipeline_mode<synchronous>, transform_indices = @transform_2, window_bounds = array<i64: 32, 128>}, {pipeline_mode = #tpu.pipeline_mode<synchronous>, transform_indices = @transform_3, window_bounds = array<i64: 1, 128>}, {pipeline_mode = #tpu.pipeline_mode<synchronous>, transform_indices = @transform_4, window_bounds = array<i64: 32, 128>}, {pipeline_mode = #tpu.pipeline_mode<synchronous>, transform_indices = @transform_5, window_bounds = array<i64: 32, 128>}, {pipeline_mode = #tpu.pipeline_mode<synchronous>, transform_indices = @transform_6, window_bounds = array<i64: 1, 128>}, {pipeline_mode = #tpu.pipeline_mode<synchronous>, transform_indices = @transform_7, window_bounds = array<i64: 32, 128>}, {pipeline_mode = #tpu.pipeline_mode<synchronous>, transform_indices = @transform_8, window_bounds = array<i64: 1, 128>}, {pipeline_mode = #tpu.pipeline_mode<synchronous>, transform_indices = @transform_9, window_bounds = array<i64: 8, 128>}]} {
    %c0 = arith.constant 0 : index
    %c0_0 = arith.constant 0 : index
    %0 = vector.load %arg2[%c0, %c0_0] : memref<32x128xbf16, #tpu.memory_space<vmem>>, vector<32x128xbf16>
    %c0_1 = arith.constant 0 : index
    %c0_2 = arith.constant 0 : index
    %1 = vector.load %arg3[%c0_1, %c0_2] : memref<32x128xbf16, #tpu.memory_space<vmem>>, vector<32x128xbf16>
    %c0_3 = arith.constant 0 : index
    %c0_4 = arith.constant 0 : index
    %2 = vector.load %arg4[%c0_3, %c0_4] : memref<1x128xf32, #tpu.memory_space<vmem>>, vector<1x128xf32>
    %c0_5 = arith.constant 0 : index
    %c0_6 = arith.constant 0 : index
    %3 = vector.load %arg1[%c0_5, %c0_6] : memref<64x32xbf16, #tpu.memory_space<vmem>>, vector<64x32xbf16>
    %cst = arith.constant dense<0.000000e+00> : vector<64x128xf32>
    %4 = tpu.matmul %3, %0, %cst {dimension_numbers = #tpu.dot_dimension_numbers<[1], [0], [0], [1], [0, 0, 1, 1], [], []>} : vector<64x32xbf16>, vector<32x128xbf16>, vector<64x128xf32> -> vector<64x128xf32>
    %5 = vector.broadcast %2 : vector<1x128xf32> to vector<64x128xf32>
    %6 = arith.addf %4, %5 : vector<64x128xf32>
    %7 = vector.shape_cast %6 : vector<64x128xf32> to vector<8x8x128xf32>
    %c0_7 = arith.constant 0 : index
    %c0_8 = arith.constant 0 : index
    %c0_9 = arith.constant 0 : index
    %8 = vector.load %arg11[%c0_7, %c0_8, %c0_9] : memref<8x8x128xf32, #tpu.memory_space<vmem>>, vector<8x8x128xf32>
    tpu.vector_store %arg11[%c0_7, %c0_8, %c0_9], %7 {strides = array<i32>} : memref<8x8x128xf32, #tpu.memory_space<vmem>>, vector<8x8x128xf32>,
    %cst_10 = arith.constant 0.000000e+00 : f32
    %9 = vector.broadcast %cst_10 : f32 to vector<8x32xf32>
    %cst_11 = arith.constant 0.000000e+00 : f32
    %10 = vector.broadcast %cst_11 : f32 to vector<8x32xf32>
    %c0_i32 = arith.constant 0 : i32
    %11 = arith.index_cast %c0_i32 : i32 to index
    %c0_12 = arith.constant 0 : index
    %c0_13 = arith.constant 0 : index
    %12 = vector.load %arg11[%11, %c0_12, %c0_13] : memref<8x8x128xf32, #tpu.memory_space<vmem>>, vector<1x8x128xf32>
    %13 = vector.shape_cast %12 : vector<1x8x128xf32> to vector<8x128xf32>
    %14 = arith.truncf %9 : vector<8x32xf32> to vector<8x32xbf16>
    %cst_14 = arith.constant dense<0.000000e+00> : vector<8x128xf32>
    %15 = tpu.matmul %14, %1, %cst_14 {dimension_numbers = #tpu.dot_dimension_numbers<[1], [0], [0], [1], [0, 0, 1, 1], [], []>} : vector<8x32xbf16>, vector<32x128xbf16>, vector<8x128xf32> -> vector<8x128xf32>
    %16 = arith.addf %13, %15 : vector<8x128xf32>
    %17 = vector.extract_strided_slice %16 {offsets = [0, 0], sizes = [8, 96], strides = [1, 1]} : vector<8x128xf32> to vector<8x96xf32>
    %18 = arith.negf %17 : vector<8x96xf32>
    %19 = math.exp %18 : vector<8x96xf32>
    %cst_15 = arith.constant 1.000000e+00 : f32
    %20 = vector.broadcast %cst_15 : f32 to vector<8x96xf32>
    %21 = arith.addf %20, %19 : vector<8x96xf32>
    %22 = arith.divf %20, %21 : vector<8x96xf32>
    %23 = vector.extract_strided_slice %16 {offsets = [0, 96], sizes = [8, 32], strides = [1, 1]} : vector<8x128xf32> to vector<8x32xf32>
    %24 = math.tanh %23 : vector<8x32xf32>
    %25 = vector.extract_strided_slice %22 {offsets = [0, 0], sizes = [8, 32], strides = [1, 1]} : vector<8x96xf32> to vector<8x32xf32>
    %26 = vector.extract_strided_slice %22 {offsets = [0, 32], sizes = [8, 32], strides = [1, 1]} : vector<8x96xf32> to vector<8x32xf32>
    %27 = vector.extract_strided_slice %22 {offsets = [0, 64], sizes = [8, 32], strides = [1, 1]} : vector<8x96xf32> to vector<8x32xf32>
    %28 = arith.mulf %26, %10 : vector<8x32xf32>
    %29 = arith.mulf %25, %24 : vector<8x32xf32>
    %30 = arith.addf %28, %29 : vector<8x32xf32>
    %31 = math.tanh %30 : vector<8x32xf32>
    %32 = arith.mulf %27, %31 : vector<8x32xf32>
    %33 = arith.index_cast %c0_i32 : i32 to index
    %c0_16 = arith.constant 0 : index
    %c0_17 = arith.constant 0 : index
    %34 = vector.load %arg12[%33, %c0_16, %c0_17] : memref<8x8x32xf32, #tpu.memory_space<vmem>>, vector<1x8x32xf32>
    %35 = vector.shape_cast %34 : vector<1x8x32xf32> to vector<8x32xf32>
    %36 = vector.shape_cast %32 : vector<8x32xf32> to vector<1x8x32xf32>
    tpu.vector_store %arg12[%33, %c0_16, %c0_17], %36 {strides = array<i32>} : memref<8x8x32xf32, #tpu.memory_space<vmem>>, vector<1x8x32xf32>,
    %c1_i32 = arith.constant 1 : i32
    %37 = arith.index_cast %c1_i32 : i32 to index
    %c0_18 = arith.constant 0 : index
    %c0_19 = arith.constant 0 : index
    %38 = vector.load %arg11[%37, %c0_18, %c0_19] : memref<8x8x128xf32, #tpu.memory_space<vmem>>, vector<1x8x128xf32>
    %39 = vector.shape_cast %38 : vector<1x8x128xf32> to vector<8x128xf32>
    %40 = arith.truncf %32 : vector<8x32xf32> to vector<8x32xbf16>
    %cst_20 = arith.constant dense<0.000000e+00> : vector<8x128xf32>
    %41 = tpu.matmul %40, %1, %cst_20 {dimension_numbers = #tpu.dot_dimension_numbers<[1], [0], [0], [1], [0, 0, 1, 1], [], []>} : vector<8x32xbf16>, vector<32x128xbf16>, vector<8x128xf32> -> vector<8x128xf32>
    %42 = arith.addf %39, %41 : vector<8x128xf32>
    %43 = vector.extract_strided_slice %42 {offsets = [0, 0], sizes = [8, 96], strides = [1, 1]} : vector<8x128xf32> to vector<8x96xf32>
    %44 = arith.negf %43 : vector<8x96xf32>
    %45 = math.exp %44 : vector<8x96xf32>
    %cst_21 = arith.constant 1.000000e+00 : f32
    %46 = vector.broadcast %cst_21 : f32 to vector<8x96xf32>
    %47 = arith.addf %46, %45 : vector<8x96xf32>
    %48 = arith.divf %46, %47 : vector<8x96xf32>
    %49 = vector.extract_strided_slice %42 {offsets = [0, 96], sizes = [8, 32], strides = [1, 1]} : vector<8x128xf32> to vector<8x32xf32>
    %50 = math.tanh %49 : vector<8x32xf32>
    %51 = vector.extract_strided_slice %48 {offsets = [0, 0], sizes = [8, 32], strides = [1, 1]} : vector<8x96xf32> to vector<8x32xf32>
    %52 = vector.extract_strided_slice %48 {offsets = [0, 32], sizes = [8, 32], strides = [1, 1]} : vector<8x96xf32> to vector<8x32xf32>
    %53 = vector.extract_strided_slice %48 {offsets = [0, 64], sizes = [8, 32], strides = [1, 1]} : vector<8x96xf32> to vector<8x32xf32>
    %54 = arith.mulf %52, %30 : vector<8x32xf32>
    %55 = arith.mulf %51, %50 : vector<8x32xf32>
    %56 = arith.addf %54, %55 : vector<8x32xf32>
    %57 = math.tanh %56 : vector<8x32xf32>
    %58 = arith.mulf %53, %57 : vector<8x32xf32>
    %59 = arith.index_cast %c1_i32 : i32 to index
    %c0_22 = arith.constant 0 : index
    %c0_23 = arith.constant 0 : index
    %60 = vector.load %arg12[%59, %c0_22, %c0_23] : memref<8x8x32xf32, #tpu.memory_space<vmem>>, vector<1x8x32xf32>
    %61 = vector.shape_cast %60 : vector<1x8x32xf32> to vector<8x32xf32>
    %62 = vector.shape_cast %58 : vector<8x32xf32> to vector<1x8x32xf32>
    tpu.vector_store %arg12[%59, %c0_22, %c0_23], %62 {strides = array<i32>} : memref<8x8x32xf32, #tpu.memory_space<vmem>>, vector<1x8x32xf32>,
    %c2_i32 = arith.constant 2 : i32
    %63 = arith.index_cast %c2_i32 : i32 to index
    %c0_24 = arith.constant 0 : index
    %c0_25 = arith.constant 0 : index
    %64 = vector.load %arg11[%63, %c0_24, %c0_25] : memref<8x8x128xf32, #tpu.memory_space<vmem>>, vector<1x8x128xf32>
    %65 = vector.shape_cast %64 : vector<1x8x128xf32> to vector<8x128xf32>
    %66 = arith.truncf %58 : vector<8x32xf32> to vector<8x32xbf16>
    %cst_26 = arith.constant dense<0.000000e+00> : vector<8x128xf32>
    %67 = tpu.matmul %66, %1, %cst_26 {dimension_numbers = #tpu.dot_dimension_numbers<[1], [0], [0], [1], [0, 0, 1, 1], [], []>} : vector<8x32xbf16>, vector<32x128xbf16>, vector<8x128xf32> -> vector<8x128xf32>
    %68 = arith.addf %65, %67 : vector<8x128xf32>
    %69 = vector.extract_strided_slice %68 {offsets = [0, 0], sizes = [8, 96], strides = [1, 1]} : vector<8x128xf32> to vector<8x96xf32>
    %70 = arith.negf %69 : vector<8x96xf32>
    %71 = math.exp %70 : vector<8x96xf32>
    %cst_27 = arith.constant 1.000000e+00 : f32
    %72 = vector.broadcast %cst_27 : f32 to vector<8x96xf32>
    %73 = arith.addf %72, %71 : vector<8x96xf32>
    %74 = arith.divf %72, %73 : vector<8x96xf32>
    %75 = vector.extract_strided_slice %68 {offsets = [0, 96], sizes = [8, 32], strides = [1, 1]} : vector<8x128xf32> to vector<8x32xf32>
    %76 = math.tanh %75 : vector<8x32xf32>
    %77 = vector.extract_strided_slice %74 {offsets = [0, 0], sizes = [8, 32], strides = [1, 1]} : vector<8x96xf32> to vector<8x32xf32>
    %78 = vector.extract_strided_slice %74 {offsets = [0, 32], sizes = [8, 32], strides = [1, 1]} : vector<8x96xf32> to vector<8x32xf32>
    %79 = vector.extract_strided_slice %74 {offsets = [0, 64], sizes = [8, 32], strides = [1, 1]} : vector<8x96xf32> to vector<8x32xf32>
    %80 = arith.mulf %78, %56 : vector<8x32xf32>
    %81 = arith.mulf %77, %76 : vector<8x32xf32>
    %82 = arith.addf %80, %81 : vector<8x32xf32>
    %83 = math.tanh %82 : vector<8x32xf32>
    %84 = arith.mulf %79, %83 : vector<8x32xf32>
    %85 = arith.index_cast %c2_i32 : i32 to index
    %c0_28 = arith.constant 0 : index
    %c0_29 = arith.constant 0 : index
    %86 = vector.load %arg12[%85, %c0_28, %c0_29] : memref<8x8x32xf32, #tpu.memory_space<vmem>>, vector<1x8x32xf32>
    %87 = vector.shape_cast %86 : vector<1x8x32xf32> to vector<8x32xf32>
    %88 = vector.shape_cast %84 : vector<8x32xf32> to vector<1x8x32xf32>
    tpu.vector_store %arg12[%85, %c0_28, %c0_29], %88 {strides = array<i32>} : memref<8x8x32xf32, #tpu.memory_space<vmem>>, vector<1x8x32xf32>,
    %c3_i32 = arith.constant 3 : i32
    %89 = arith.index_cast %c3_i32 : i32 to index
    %c0_30 = arith.constant 0 : index
    %c0_31 = arith.constant 0 : index
    %90 = vector.load %arg11[%89, %c0_30, %c0_31] : memref<8x8x128xf32, #tpu.memory_space<vmem>>, vector<1x8x128xf32>
    %91 = vector.shape_cast %90 : vector<1x8x128xf32> to vector<8x128xf32>
    %92 = arith.truncf %84 : vector<8x32xf32> to vector<8x32xbf16>
    %cst_32 = arith.constant dense<0.000000e+00> : vector<8x128xf32>
    %93 = tpu.matmul %92, %1, %cst_32 {dimension_numbers = #tpu.dot_dimension_numbers<[1], [0], [0], [1], [0, 0, 1, 1], [], []>} : vector<8x32xbf16>, vector<32x128xbf16>, vector<8x128xf32> -> vector<8x128xf32>
    %94 = arith.addf %91, %93 : vector<8x128xf32>
    %95 = vector.extract_strided_slice %94 {offsets = [0, 0], sizes = [8, 96], strides = [1, 1]} : vector<8x128xf32> to vector<8x96xf32>
    %96 = arith.negf %95 : vector<8x96xf32>
    %97 = math.exp %96 : vector<8x96xf32>
    %cst_33 = arith.constant 1.000000e+00 : f32
    %98 = vector.broadcast %cst_33 : f32 to vector<8x96xf32>
    %99 = arith.addf %98, %97 : vector<8x96xf32>
    %100 = arith.divf %98, %99 : vector<8x96xf32>
    %101 = vector.extract_strided_slice %94 {offsets = [0, 96], sizes = [8, 32], strides = [1, 1]} : vector<8x128xf32> to vector<8x32xf32>
    %102 = math.tanh %101 : vector<8x32xf32>
    %103 = vector.extract_strided_slice %100 {offsets = [0, 0], sizes = [8, 32], strides = [1, 1]} : vector<8x96xf32> to vector<8x32xf32>
    %104 = vector.extract_strided_slice %100 {offsets = [0, 32], sizes = [8, 32], strides = [1, 1]} : vector<8x96xf32> to vector<8x32xf32>
    %105 = vector.extract_strided_slice %100 {offsets = [0, 64], sizes = [8, 32], strides = [1, 1]} : vector<8x96xf32> to vector<8x32xf32>
    %106 = arith.mulf %104, %82 : vector<8x32xf32>
    %107 = arith.mulf %103, %102 : vector<8x32xf32>
    %108 = arith.addf %106, %107 : vector<8x32xf32>
    %109 = math.tanh %108 : vector<8x32xf32>
    %110 = arith.mulf %105, %109 : vector<8x32xf32>
    %111 = arith.index_cast %c3_i32 : i32 to index
    %c0_34 = arith.constant 0 : index
    %c0_35 = arith.constant 0 : index
    %112 = vector.load %arg12[%111, %c0_34, %c0_35] : memref<8x8x32xf32, #tpu.memory_space<vmem>>, vector<1x8x32xf32>
    %113 = vector.shape_cast %112 : vector<1x8x32xf32> to vector<8x32xf32>
    %114 = vector.shape_cast %110 : vector<8x32xf32> to vector<1x8x32xf32>
    tpu.vector_store %arg12[%111, %c0_34, %c0_35], %114 {strides = array<i32>} : memref<8x8x32xf32, #tpu.memory_space<vmem>>, vector<1x8x32xf32>,
    %c4_i32 = arith.constant 4 : i32
    %115 = arith.index_cast %c4_i32 : i32 to index
    %c0_36 = arith.constant 0 : index
    %c0_37 = arith.constant 0 : index
    %116 = vector.load %arg11[%115, %c0_36, %c0_37] : memref<8x8x128xf32, #tpu.memory_space<vmem>>, vector<1x8x128xf32>
    %117 = vector.shape_cast %116 : vector<1x8x128xf32> to vector<8x128xf32>
    %118 = arith.truncf %110 : vector<8x32xf32> to vector<8x32xbf16>
    %cst_38 = arith.constant dense<0.000000e+00> : vector<8x128xf32>
    %119 = tpu.matmul %118, %1, %cst_38 {dimension_numbers = #tpu.dot_dimension_numbers<[1], [0], [0], [1], [0, 0, 1, 1], [], []>} : vector<8x32xbf16>, vector<32x128xbf16>, vector<8x128xf32> -> vector<8x128xf32>
    %120 = arith.addf %117, %119 : vector<8x128xf32>
    %121 = vector.extract_strided_slice %120 {offsets = [0, 0], sizes = [8, 96], strides = [1, 1]} : vector<8x128xf32> to vector<8x96xf32>
    %122 = arith.negf %121 : vector<8x96xf32>
    %123 = math.exp %122 : vector<8x96xf32>
    %cst_39 = arith.constant 1.000000e+00 : f32
    %124 = vector.broadcast %cst_39 : f32 to vector<8x96xf32>
    %125 = arith.addf %124, %123 : vector<8x96xf32>
    %126 = arith.divf %124, %125 : vector<8x96xf32>
    %127 = vector.extract_strided_slice %120 {offsets = [0, 96], sizes = [8, 32], strides = [1, 1]} : vector<8x128xf32> to vector<8x32xf32>
    %128 = math.tanh %127 : vector<8x32xf32>
    %129 = vector.extract_strided_slice %126 {offsets = [0, 0], sizes = [8, 32], strides = [1, 1]} : vector<8x96xf32> to vector<8x32xf32>
    %130 = vector.extract_strided_slice %126 {offsets = [0, 32], sizes = [8, 32], strides = [1, 1]} : vector<8x96xf32> to vector<8x32xf32>
    %131 = vector.extract_strided_slice %126 {offsets = [0, 64], sizes = [8, 32], strides = [1, 1]} : vector<8x96xf32> to vector<8x32xf32>
    %132 = arith.mulf %130, %108 : vector<8x32xf32>
    %133 = arith.mulf %129, %128 : vector<8x32xf32>
    %134 = arith.addf %132, %133 : vector<8x32xf32>
    %135 = math.tanh %134 : vector<8x32xf32>
    %136 = arith.mulf %131, %135 : vector<8x32xf32>
    %137 = arith.index_cast %c4_i32 : i32 to index
    %c0_40 = arith.constant 0 : index
    %c0_41 = arith.constant 0 : index
    %138 = vector.load %arg12[%137, %c0_40, %c0_41] : memref<8x8x32xf32, #tpu.memory_space<vmem>>, vector<1x8x32xf32>
    %139 = vector.shape_cast %138 : vector<1x8x32xf32> to vector<8x32xf32>
    %140 = vector.shape_cast %136 : vector<8x32xf32> to vector<1x8x32xf32>
    tpu.vector_store %arg12[%137, %c0_40, %c0_41], %140 {strides = array<i32>} : memref<8x8x32xf32, #tpu.memory_space<vmem>>, vector<1x8x32xf32>,
    %c5_i32 = arith.constant 5 : i32
    %141 = arith.index_cast %c5_i32 : i32 to index
    %c0_42 = arith.constant 0 : index
    %c0_43 = arith.constant 0 : index
    %142 = vector.load %arg11[%141, %c0_42, %c0_43] : memref<8x8x128xf32, #tpu.memory_space<vmem>>, vector<1x8x128xf32>
    %143 = vector.shape_cast %142 : vector<1x8x128xf32> to vector<8x128xf32>
    %144 = arith.truncf %136 : vector<8x32xf32> to vector<8x32xbf16>
    %cst_44 = arith.constant dense<0.000000e+00> : vector<8x128xf32>
    %145 = tpu.matmul %144, %1, %cst_44 {dimension_numbers = #tpu.dot_dimension_numbers<[1], [0], [0], [1], [0, 0, 1, 1], [], []>} : vector<8x32xbf16>, vector<32x128xbf16>, vector<8x128xf32> -> vector<8x128xf32>
    %146 = arith.addf %143, %145 : vector<8x128xf32>
    %147 = vector.extract_strided_slice %146 {offsets = [0, 0], sizes = [8, 96], strides = [1, 1]} : vector<8x128xf32> to vector<8x96xf32>
    %148 = arith.negf %147 : vector<8x96xf32>
    %149 = math.exp %148 : vector<8x96xf32>
    %cst_45 = arith.constant 1.000000e+00 : f32
    %150 = vector.broadcast %cst_45 : f32 to vector<8x96xf32>
    %151 = arith.addf %150, %149 : vector<8x96xf32>
    %152 = arith.divf %150, %151 : vector<8x96xf32>
    %153 = vector.extract_strided_slice %146 {offsets = [0, 96], sizes = [8, 32], strides = [1, 1]} : vector<8x128xf32> to vector<8x32xf32>
    %154 = math.tanh %153 : vector<8x32xf32>
    %155 = vector.extract_strided_slice %152 {offsets = [0, 0], sizes = [8, 32], strides = [1, 1]} : vector<8x96xf32> to vector<8x32xf32>
    %156 = vector.extract_strided_slice %152 {offsets = [0, 32], sizes = [8, 32], strides = [1, 1]} : vector<8x96xf32> to vector<8x32xf32>
    %157 = vector.extract_strided_slice %152 {offsets = [0, 64], sizes = [8, 32], strides = [1, 1]} : vector<8x96xf32> to vector<8x32xf32>
    %158 = arith.mulf %156, %134 : vector<8x32xf32>
    %159 = arith.mulf %155, %154 : vector<8x32xf32>
    %160 = arith.addf %158, %159 : vector<8x32xf32>
    %161 = math.tanh %160 : vector<8x32xf32>
    %162 = arith.mulf %157, %161 : vector<8x32xf32>
    %163 = arith.index_cast %c5_i32 : i32 to index
    %c0_46 = arith.constant 0 : index
    %c0_47 = arith.constant 0 : index
    %164 = vector.load %arg12[%163, %c0_46, %c0_47] : memref<8x8x32xf32, #tpu.memory_space<vmem>>, vector<1x8x32xf32>
    %165 = vector.shape_cast %164 : vector<1x8x32xf32> to vector<8x32xf32>
    %166 = vector.shape_cast %162 : vector<8x32xf32> to vector<1x8x32xf32>
    tpu.vector_store %arg12[%163, %c0_46, %c0_47], %166 {strides = array<i32>} : memref<8x8x32xf32, #tpu.memory_space<vmem>>, vector<1x8x32xf32>,
    %c6_i32 = arith.constant 6 : i32
    %167 = arith.index_cast %c6_i32 : i32 to index
    %c0_48 = arith.constant 0 : index
    %c0_49 = arith.constant 0 : index
    %168 = vector.load %arg11[%167, %c0_48, %c0_49] : memref<8x8x128xf32, #tpu.memory_space<vmem>>, vector<1x8x128xf32>
    %169 = vector.shape_cast %168 : vector<1x8x128xf32> to vector<8x128xf32>
    %170 = arith.truncf %162 : vector<8x32xf32> to vector<8x32xbf16>
    %cst_50 = arith.constant dense<0.000000e+00> : vector<8x128xf32>
    %171 = tpu.matmul %170, %1, %cst_50 {dimension_numbers = #tpu.dot_dimension_numbers<[1], [0], [0], [1], [0, 0, 1, 1], [], []>} : vector<8x32xbf16>, vector<32x128xbf16>, vector<8x128xf32> -> vector<8x128xf32>
    %172 = arith.addf %169, %171 : vector<8x128xf32>
    %173 = vector.extract_strided_slice %172 {offsets = [0, 0], sizes = [8, 96], strides = [1, 1]} : vector<8x128xf32> to vector<8x96xf32>
    %174 = arith.negf %173 : vector<8x96xf32>
    %175 = math.exp %174 : vector<8x96xf32>
    %cst_51 = arith.constant 1.000000e+00 : f32
    %176 = vector.broadcast %cst_51 : f32 to vector<8x96xf32>
    %177 = arith.addf %176, %175 : vector<8x96xf32>
    %178 = arith.divf %176, %177 : vector<8x96xf32>
    %179 = vector.extract_strided_slice %172 {offsets = [0, 96], sizes = [8, 32], strides = [1, 1]} : vector<8x128xf32> to vector<8x32xf32>
    %180 = math.tanh %179 : vector<8x32xf32>
    %181 = vector.extract_strided_slice %178 {offsets = [0, 0], sizes = [8, 32], strides = [1, 1]} : vector<8x96xf32> to vector<8x32xf32>
    %182 = vector.extract_strided_slice %178 {offsets = [0, 32], sizes = [8, 32], strides = [1, 1]} : vector<8x96xf32> to vector<8x32xf32>
    %183 = vector.extract_strided_slice %178 {offsets = [0, 64], sizes = [8, 32], strides = [1, 1]} : vector<8x96xf32> to vector<8x32xf32>
    %184 = arith.mulf %182, %160 : vector<8x32xf32>
    %185 = arith.mulf %181, %180 : vector<8x32xf32>
    %186 = arith.addf %184, %185 : vector<8x32xf32>
    %187 = math.tanh %186 : vector<8x32xf32>
    %188 = arith.mulf %183, %187 : vector<8x32xf32>
    %189 = arith.index_cast %c6_i32 : i32 to index
    %c0_52 = arith.constant 0 : index
    %c0_53 = arith.constant 0 : index
    %190 = vector.load %arg12[%189, %c0_52, %c0_53] : memref<8x8x32xf32, #tpu.memory_space<vmem>>, vector<1x8x32xf32>
    %191 = vector.shape_cast %190 : vector<1x8x32xf32> to vector<8x32xf32>
    %192 = vector.shape_cast %188 : vector<8x32xf32> to vector<1x8x32xf32>
    tpu.vector_store %arg12[%189, %c0_52, %c0_53], %192 {strides = array<i32>} : memref<8x8x32xf32, #tpu.memory_space<vmem>>, vector<1x8x32xf32>,
    %c7_i32 = arith.constant 7 : i32
    %193 = arith.index_cast %c7_i32 : i32 to index
    %c0_54 = arith.constant 0 : index
    %c0_55 = arith.constant 0 : index
    %194 = vector.load %arg11[%193, %c0_54, %c0_55] : memref<8x8x128xf32, #tpu.memory_space<vmem>>, vector<1x8x128xf32>
    %195 = vector.shape_cast %194 : vector<1x8x128xf32> to vector<8x128xf32>
    %196 = arith.truncf %188 : vector<8x32xf32> to vector<8x32xbf16>
    %cst_56 = arith.constant dense<0.000000e+00> : vector<8x128xf32>
    %197 = tpu.matmul %196, %1, %cst_56 {dimension_numbers = #tpu.dot_dimension_numbers<[1], [0], [0], [1], [0, 0, 1, 1], [], []>} : vector<8x32xbf16>, vector<32x128xbf16>, vector<8x128xf32> -> vector<8x128xf32>
    %198 = arith.addf %195, %197 : vector<8x128xf32>
    %199 = vector.extract_strided_slice %198 {offsets = [0, 0], sizes = [8, 96], strides = [1, 1]} : vector<8x128xf32> to vector<8x96xf32>
    %200 = arith.negf %199 : vector<8x96xf32>
    %201 = math.exp %200 : vector<8x96xf32>
    %cst_57 = arith.constant 1.000000e+00 : f32
    %202 = vector.broadcast %cst_57 : f32 to vector<8x96xf32>
    %203 = arith.addf %202, %201 : vector<8x96xf32>
    %204 = arith.divf %202, %203 : vector<8x96xf32>
    %205 = vector.extract_strided_slice %198 {offsets = [0, 96], sizes = [8, 32], strides = [1, 1]} : vector<8x128xf32> to vector<8x32xf32>
    %206 = math.tanh %205 : vector<8x32xf32>
    %207 = vector.extract_strided_slice %204 {offsets = [0, 0], sizes = [8, 32], strides = [1, 1]} : vector<8x96xf32> to vector<8x32xf32>
    %208 = vector.extract_strided_slice %204 {offsets = [0, 32], sizes = [8, 32], strides = [1, 1]} : vector<8x96xf32> to vector<8x32xf32>
    %209 = vector.extract_strided_slice %204 {offsets = [0, 64], sizes = [8, 32], strides = [1, 1]} : vector<8x96xf32> to vector<8x32xf32>
    %210 = arith.mulf %208, %186 : vector<8x32xf32>
    %211 = arith.mulf %207, %206 : vector<8x32xf32>
    %212 = arith.addf %210, %211 : vector<8x32xf32>
    %213 = math.tanh %212 : vector<8x32xf32>
    %214 = arith.mulf %209, %213 : vector<8x32xf32>
    %215 = arith.index_cast %c7_i32 : i32 to index
    %c0_58 = arith.constant 0 : index
    %c0_59 = arith.constant 0 : index
    %216 = vector.load %arg12[%215, %c0_58, %c0_59] : memref<8x8x32xf32, #tpu.memory_space<vmem>>, vector<1x8x32xf32>
    %217 = vector.shape_cast %216 : vector<1x8x32xf32> to vector<8x32xf32>
    %218 = vector.shape_cast %214 : vector<8x32xf32> to vector<1x8x32xf32>
    tpu.vector_store %arg12[%215, %c0_58, %c0_59], %218 {strides = array<i32>} : memref<8x8x32xf32, #tpu.memory_space<vmem>>, vector<1x8x32xf32>,
    %c8_i32 = arith.constant 8 : i32
    %c0_60 = arith.constant 0 : index
    %c0_61 = arith.constant 0 : index
    %219 = vector.load %arg5[%c0_60, %c0_61] : memref<32x128xbf16, #tpu.memory_space<vmem>>, vector<32x128xbf16>
    %c0_62 = arith.constant 0 : index
    %c0_63 = arith.constant 0 : index
    %220 = vector.load %arg6[%c0_62, %c0_63] : memref<32x128xbf16, #tpu.memory_space<vmem>>, vector<32x128xbf16>
    %c0_64 = arith.constant 0 : index
    %c0_65 = arith.constant 0 : index
    %221 = vector.load %arg7[%c0_64, %c0_65] : memref<1x128xf32, #tpu.memory_space<vmem>>, vector<1x128xf32>
    %c0_66 = arith.constant 0 : index
    %c0_67 = arith.constant 0 : index
    %c0_68 = arith.constant 0 : index
    %222 = vector.load %arg12[%c0_66, %c0_67, %c0_68] : memref<8x8x32xf32, #tpu.memory_space<vmem>>, vector<8x8x32xf32>
    %223 = vector.shape_cast %222 : vector<8x8x32xf32> to vector<64x32xf32>
    %224 = arith.truncf %223 : vector<64x32xf32> to vector<64x32xbf16>
    %cst_69 = arith.constant dense<0.000000e+00> : vector<64x128xf32>
    %225 = tpu.matmul %224, %219, %cst_69 {dimension_numbers = #tpu.dot_dimension_numbers<[1], [0], [0], [1], [0, 0, 1, 1], [], []>} : vector<64x32xbf16>, vector<32x128xbf16>, vector<64x128xf32> -> vector<64x128xf32>
    %226 = vector.broadcast %221 : vector<1x128xf32> to vector<64x128xf32>
    %227 = arith.addf %225, %226 : vector<64x128xf32>
    %228 = vector.shape_cast %227 : vector<64x128xf32> to vector<8x8x128xf32>
    %c0_70 = arith.constant 0 : index
    %c0_71 = arith.constant 0 : index
    %c0_72 = arith.constant 0 : index
    %229 = vector.load %arg11[%c0_70, %c0_71, %c0_72] : memref<8x8x128xf32, #tpu.memory_space<vmem>>, vector<8x8x128xf32>
    tpu.vector_store %arg11[%c0_70, %c0_71, %c0_72], %228 {strides = array<i32>} : memref<8x8x128xf32, #tpu.memory_space<vmem>>, vector<8x8x128xf32>,
    %cst_73 = arith.constant 0.000000e+00 : f32
    %230 = vector.broadcast %cst_73 : f32 to vector<8x32xf32>
    %cst_74 = arith.constant 0.000000e+00 : f32
    %231 = vector.broadcast %cst_74 : f32 to vector<8x32xf32>
    %c0_i32_75 = arith.constant 0 : i32
    %232 = arith.index_cast %c0_i32_75 : i32 to index
    %c0_76 = arith.constant 0 : index
    %c0_77 = arith.constant 0 : index
    %233 = vector.load %arg11[%232, %c0_76, %c0_77] : memref<8x8x128xf32, #tpu.memory_space<vmem>>, vector<1x8x128xf32>
    %234 = vector.shape_cast %233 : vector<1x8x128xf32> to vector<8x128xf32>
    %235 = arith.truncf %230 : vector<8x32xf32> to vector<8x32xbf16>
    %cst_78 = arith.constant dense<0.000000e+00> : vector<8x128xf32>
    %236 = tpu.matmul %235, %220, %cst_78 {dimension_numbers = #tpu.dot_dimension_numbers<[1], [0], [0], [1], [0, 0, 1, 1], [], []>} : vector<8x32xbf16>, vector<32x128xbf16>, vector<8x128xf32> -> vector<8x128xf32>
    %237 = arith.addf %234, %236 : vector<8x128xf32>
    %238 = vector.extract_strided_slice %237 {offsets = [0, 0], sizes = [8, 96], strides = [1, 1]} : vector<8x128xf32> to vector<8x96xf32>
    %239 = arith.negf %238 : vector<8x96xf32>
    %240 = math.exp %239 : vector<8x96xf32>
    %cst_79 = arith.constant 1.000000e+00 : f32
    %241 = vector.broadcast %cst_79 : f32 to vector<8x96xf32>
    %242 = arith.addf %241, %240 : vector<8x96xf32>
    %243 = arith.divf %241, %242 : vector<8x96xf32>
    %244 = vector.extract_strided_slice %237 {offsets = [0, 96], sizes = [8, 32], strides = [1, 1]} : vector<8x128xf32> to vector<8x32xf32>
    %245 = math.tanh %244 : vector<8x32xf32>
    %246 = vector.extract_strided_slice %243 {offsets = [0, 0], sizes = [8, 32], strides = [1, 1]} : vector<8x96xf32> to vector<8x32xf32>
    %247 = vector.extract_strided_slice %243 {offsets = [0, 32], sizes = [8, 32], strides = [1, 1]} : vector<8x96xf32> to vector<8x32xf32>
    %248 = vector.extract_strided_slice %243 {offsets = [0, 64], sizes = [8, 32], strides = [1, 1]} : vector<8x96xf32> to vector<8x32xf32>
    %249 = arith.mulf %247, %231 : vector<8x32xf32>
    %250 = arith.mulf %246, %245 : vector<8x32xf32>
    %251 = arith.addf %249, %250 : vector<8x32xf32>
    %252 = math.tanh %251 : vector<8x32xf32>
    %253 = arith.mulf %248, %252 : vector<8x32xf32>
    %c1_i32_80 = arith.constant 1 : i32
    %254 = arith.index_cast %c1_i32_80 : i32 to index
    %c0_81 = arith.constant 0 : index
    %c0_82 = arith.constant 0 : index
    %255 = vector.load %arg11[%254, %c0_81, %c0_82] : memref<8x8x128xf32, #tpu.memory_space<vmem>>, vector<1x8x128xf32>
    %256 = vector.shape_cast %255 : vector<1x8x128xf32> to vector<8x128xf32>
    %257 = arith.truncf %253 : vector<8x32xf32> to vector<8x32xbf16>
    %cst_83 = arith.constant dense<0.000000e+00> : vector<8x128xf32>
    %258 = tpu.matmul %257, %220, %cst_83 {dimension_numbers = #tpu.dot_dimension_numbers<[1], [0], [0], [1], [0, 0, 1, 1], [], []>} : vector<8x32xbf16>, vector<32x128xbf16>, vector<8x128xf32> -> vector<8x128xf32>
    %259 = arith.addf %256, %258 : vector<8x128xf32>
    %260 = vector.extract_strided_slice %259 {offsets = [0, 0], sizes = [8, 96], strides = [1, 1]} : vector<8x128xf32> to vector<8x96xf32>
    %261 = arith.negf %260 : vector<8x96xf32>
    %262 = math.exp %261 : vector<8x96xf32>
    %cst_84 = arith.constant 1.000000e+00 : f32
    %263 = vector.broadcast %cst_84 : f32 to vector<8x96xf32>
    %264 = arith.addf %263, %262 : vector<8x96xf32>
    %265 = arith.divf %263, %264 : vector<8x96xf32>
    %266 = vector.extract_strided_slice %259 {offsets = [0, 96], sizes = [8, 32], strides = [1, 1]} : vector<8x128xf32> to vector<8x32xf32>
    %267 = math.tanh %266 : vector<8x32xf32>
    %268 = vector.extract_strided_slice %265 {offsets = [0, 0], sizes = [8, 32], strides = [1, 1]} : vector<8x96xf32> to vector<8x32xf32>
    %269 = vector.extract_strided_slice %265 {offsets = [0, 32], sizes = [8, 32], strides = [1, 1]} : vector<8x96xf32> to vector<8x32xf32>
    %270 = vector.extract_strided_slice %265 {offsets = [0, 64], sizes = [8, 32], strides = [1, 1]} : vector<8x96xf32> to vector<8x32xf32>
    %271 = arith.mulf %269, %251 : vector<8x32xf32>
    %272 = arith.mulf %268, %267 : vector<8x32xf32>
    %273 = arith.addf %271, %272 : vector<8x32xf32>
    %274 = math.tanh %273 : vector<8x32xf32>
    %275 = arith.mulf %270, %274 : vector<8x32xf32>
    %c2_i32_85 = arith.constant 2 : i32
    %276 = arith.index_cast %c2_i32_85 : i32 to index
    %c0_86 = arith.constant 0 : index
    %c0_87 = arith.constant 0 : index
    %277 = vector.load %arg11[%276, %c0_86, %c0_87] : memref<8x8x128xf32, #tpu.memory_space<vmem>>, vector<1x8x128xf32>
    %278 = vector.shape_cast %277 : vector<1x8x128xf32> to vector<8x128xf32>
    %279 = arith.truncf %275 : vector<8x32xf32> to vector<8x32xbf16>
    %cst_88 = arith.constant dense<0.000000e+00> : vector<8x128xf32>
    %280 = tpu.matmul %279, %220, %cst_88 {dimension_numbers = #tpu.dot_dimension_numbers<[1], [0], [0], [1], [0, 0, 1, 1], [], []>} : vector<8x32xbf16>, vector<32x128xbf16>, vector<8x128xf32> -> vector<8x128xf32>
    %281 = arith.addf %278, %280 : vector<8x128xf32>
    %282 = vector.extract_strided_slice %281 {offsets = [0, 0], sizes = [8, 96], strides = [1, 1]} : vector<8x128xf32> to vector<8x96xf32>
    %283 = arith.negf %282 : vector<8x96xf32>
    %284 = math.exp %283 : vector<8x96xf32>
    %cst_89 = arith.constant 1.000000e+00 : f32
    %285 = vector.broadcast %cst_89 : f32 to vector<8x96xf32>
    %286 = arith.addf %285, %284 : vector<8x96xf32>
    %287 = arith.divf %285, %286 : vector<8x96xf32>
    %288 = vector.extract_strided_slice %281 {offsets = [0, 96], sizes = [8, 32], strides = [1, 1]} : vector<8x128xf32> to vector<8x32xf32>
    %289 = math.tanh %288 : vector<8x32xf32>
    %290 = vector.extract_strided_slice %287 {offsets = [0, 0], sizes = [8, 32], strides = [1, 1]} : vector<8x96xf32> to vector<8x32xf32>
    %291 = vector.extract_strided_slice %287 {offsets = [0, 32], sizes = [8, 32], strides = [1, 1]} : vector<8x96xf32> to vector<8x32xf32>
    %292 = vector.extract_strided_slice %287 {offsets = [0, 64], sizes = [8, 32], strides = [1, 1]} : vector<8x96xf32> to vector<8x32xf32>
    %293 = arith.mulf %291, %273 : vector<8x32xf32>
    %294 = arith.mulf %290, %289 : vector<8x32xf32>
    %295 = arith.addf %293, %294 : vector<8x32xf32>
    %296 = math.tanh %295 : vector<8x32xf32>
    %297 = arith.mulf %292, %296 : vector<8x32xf32>
    %c3_i32_90 = arith.constant 3 : i32
    %298 = arith.index_cast %c3_i32_90 : i32 to index
    %c0_91 = arith.constant 0 : index
    %c0_92 = arith.constant 0 : index
    %299 = vector.load %arg11[%298, %c0_91, %c0_92] : memref<8x8x128xf32, #tpu.memory_space<vmem>>, vector<1x8x128xf32>
    %300 = vector.shape_cast %299 : vector<1x8x128xf32> to vector<8x128xf32>
    %301 = arith.truncf %297 : vector<8x32xf32> to vector<8x32xbf16>
    %cst_93 = arith.constant dense<0.000000e+00> : vector<8x128xf32>
    %302 = tpu.matmul %301, %220, %cst_93 {dimension_numbers = #tpu.dot_dimension_numbers<[1], [0], [0], [1], [0, 0, 1, 1], [], []>} : vector<8x32xbf16>, vector<32x128xbf16>, vector<8x128xf32> -> vector<8x128xf32>
    %303 = arith.addf %300, %302 : vector<8x128xf32>
    %304 = vector.extract_strided_slice %303 {offsets = [0, 0], sizes = [8, 96], strides = [1, 1]} : vector<8x128xf32> to vector<8x96xf32>
    %305 = arith.negf %304 : vector<8x96xf32>
    %306 = math.exp %305 : vector<8x96xf32>
    %cst_94 = arith.constant 1.000000e+00 : f32
    %307 = vector.broadcast %cst_94 : f32 to vector<8x96xf32>
    %308 = arith.addf %307, %306 : vector<8x96xf32>
    %309 = arith.divf %307, %308 : vector<8x96xf32>
    %310 = vector.extract_strided_slice %303 {offsets = [0, 96], sizes = [8, 32], strides = [1, 1]} : vector<8x128xf32> to vector<8x32xf32>
    %311 = math.tanh %310 : vector<8x32xf32>
    %312 = vector.extract_strided_slice %309 {offsets = [0, 0], sizes = [8, 32], strides = [1, 1]} : vector<8x96xf32> to vector<8x32xf32>
    %313 = vector.extract_strided_slice %309 {offsets = [0, 32], sizes = [8, 32], strides = [1, 1]} : vector<8x96xf32> to vector<8x32xf32>
    %314 = vector.extract_strided_slice %309 {offsets = [0, 64], sizes = [8, 32], strides = [1, 1]} : vector<8x96xf32> to vector<8x32xf32>
    %315 = arith.mulf %313, %295 : vector<8x32xf32>
    %316 = arith.mulf %312, %311 : vector<8x32xf32>
    %317 = arith.addf %315, %316 : vector<8x32xf32>
    %318 = math.tanh %317 : vector<8x32xf32>
    %319 = arith.mulf %314, %318 : vector<8x32xf32>
    %c4_i32_95 = arith.constant 4 : i32
    %320 = arith.index_cast %c4_i32_95 : i32 to index
    %c0_96 = arith.constant 0 : index
    %c0_97 = arith.constant 0 : index
    %321 = vector.load %arg11[%320, %c0_96, %c0_97] : memref<8x8x128xf32, #tpu.memory_space<vmem>>, vector<1x8x128xf32>
    %322 = vector.shape_cast %321 : vector<1x8x128xf32> to vector<8x128xf32>
    %323 = arith.truncf %319 : vector<8x32xf32> to vector<8x32xbf16>
    %cst_98 = arith.constant dense<0.000000e+00> : vector<8x128xf32>
    %324 = tpu.matmul %323, %220, %cst_98 {dimension_numbers = #tpu.dot_dimension_numbers<[1], [0], [0], [1], [0, 0, 1, 1], [], []>} : vector<8x32xbf16>, vector<32x128xbf16>, vector<8x128xf32> -> vector<8x128xf32>
    %325 = arith.addf %322, %324 : vector<8x128xf32>
    %326 = vector.extract_strided_slice %325 {offsets = [0, 0], sizes = [8, 96], strides = [1, 1]} : vector<8x128xf32> to vector<8x96xf32>
    %327 = arith.negf %326 : vector<8x96xf32>
    %328 = math.exp %327 : vector<8x96xf32>
    %cst_99 = arith.constant 1.000000e+00 : f32
    %329 = vector.broadcast %cst_99 : f32 to vector<8x96xf32>
    %330 = arith.addf %329, %328 : vector<8x96xf32>
    %331 = arith.divf %329, %330 : vector<8x96xf32>
    %332 = vector.extract_strided_slice %325 {offsets = [0, 96], sizes = [8, 32], strides = [1, 1]} : vector<8x128xf32> to vector<8x32xf32>
    %333 = math.tanh %332 : vector<8x32xf32>
    %334 = vector.extract_strided_slice %331 {offsets = [0, 0], sizes = [8, 32], strides = [1, 1]} : vector<8x96xf32> to vector<8x32xf32>
    %335 = vector.extract_strided_slice %331 {offsets = [0, 32], sizes = [8, 32], strides = [1, 1]} : vector<8x96xf32> to vector<8x32xf32>
    %336 = vector.extract_strided_slice %331 {offsets = [0, 64], sizes = [8, 32], strides = [1, 1]} : vector<8x96xf32> to vector<8x32xf32>
    %337 = arith.mulf %335, %317 : vector<8x32xf32>
    %338 = arith.mulf %334, %333 : vector<8x32xf32>
    %339 = arith.addf %337, %338 : vector<8x32xf32>
    %340 = math.tanh %339 : vector<8x32xf32>
    %341 = arith.mulf %336, %340 : vector<8x32xf32>
    %c5_i32_100 = arith.constant 5 : i32
    %342 = arith.index_cast %c5_i32_100 : i32 to index
    %c0_101 = arith.constant 0 : index
    %c0_102 = arith.constant 0 : index
    %343 = vector.load %arg11[%342, %c0_101, %c0_102] : memref<8x8x128xf32, #tpu.memory_space<vmem>>, vector<1x8x128xf32>
    %344 = vector.shape_cast %343 : vector<1x8x128xf32> to vector<8x128xf32>
    %345 = arith.truncf %341 : vector<8x32xf32> to vector<8x32xbf16>
    %cst_103 = arith.constant dense<0.000000e+00> : vector<8x128xf32>
    %346 = tpu.matmul %345, %220, %cst_103 {dimension_numbers = #tpu.dot_dimension_numbers<[1], [0], [0], [1], [0, 0, 1, 1], [], []>} : vector<8x32xbf16>, vector<32x128xbf16>, vector<8x128xf32> -> vector<8x128xf32>
    %347 = arith.addf %344, %346 : vector<8x128xf32>
    %348 = vector.extract_strided_slice %347 {offsets = [0, 0], sizes = [8, 96], strides = [1, 1]} : vector<8x128xf32> to vector<8x96xf32>
    %349 = arith.negf %348 : vector<8x96xf32>
    %350 = math.exp %349 : vector<8x96xf32>
    %cst_104 = arith.constant 1.000000e+00 : f32
    %351 = vector.broadcast %cst_104 : f32 to vector<8x96xf32>
    %352 = arith.addf %351, %350 : vector<8x96xf32>
    %353 = arith.divf %351, %352 : vector<8x96xf32>
    %354 = vector.extract_strided_slice %347 {offsets = [0, 96], sizes = [8, 32], strides = [1, 1]} : vector<8x128xf32> to vector<8x32xf32>
    %355 = math.tanh %354 : vector<8x32xf32>
    %356 = vector.extract_strided_slice %353 {offsets = [0, 0], sizes = [8, 32], strides = [1, 1]} : vector<8x96xf32> to vector<8x32xf32>
    %357 = vector.extract_strided_slice %353 {offsets = [0, 32], sizes = [8, 32], strides = [1, 1]} : vector<8x96xf32> to vector<8x32xf32>
    %358 = vector.extract_strided_slice %353 {offsets = [0, 64], sizes = [8, 32], strides = [1, 1]} : vector<8x96xf32> to vector<8x32xf32>
    %359 = arith.mulf %357, %339 : vector<8x32xf32>
    %360 = arith.mulf %356, %355 : vector<8x32xf32>
    %361 = arith.addf %359, %360 : vector<8x32xf32>
    %362 = math.tanh %361 : vector<8x32xf32>
    %363 = arith.mulf %358, %362 : vector<8x32xf32>
    %c6_i32_105 = arith.constant 6 : i32
    %364 = arith.index_cast %c6_i32_105 : i32 to index
    %c0_106 = arith.constant 0 : index
    %c0_107 = arith.constant 0 : index
    %365 = vector.load %arg11[%364, %c0_106, %c0_107] : memref<8x8x128xf32, #tpu.memory_space<vmem>>, vector<1x8x128xf32>
    %366 = vector.shape_cast %365 : vector<1x8x128xf32> to vector<8x128xf32>
    %367 = arith.truncf %363 : vector<8x32xf32> to vector<8x32xbf16>
    %cst_108 = arith.constant dense<0.000000e+00> : vector<8x128xf32>
    %368 = tpu.matmul %367, %220, %cst_108 {dimension_numbers = #tpu.dot_dimension_numbers<[1], [0], [0], [1], [0, 0, 1, 1], [], []>} : vector<8x32xbf16>, vector<32x128xbf16>, vector<8x128xf32> -> vector<8x128xf32>
    %369 = arith.addf %366, %368 : vector<8x128xf32>
    %370 = vector.extract_strided_slice %369 {offsets = [0, 0], sizes = [8, 96], strides = [1, 1]} : vector<8x128xf32> to vector<8x96xf32>
    %371 = arith.negf %370 : vector<8x96xf32>
    %372 = math.exp %371 : vector<8x96xf32>
    %cst_109 = arith.constant 1.000000e+00 : f32
    %373 = vector.broadcast %cst_109 : f32 to vector<8x96xf32>
    %374 = arith.addf %373, %372 : vector<8x96xf32>
    %375 = arith.divf %373, %374 : vector<8x96xf32>
    %376 = vector.extract_strided_slice %369 {offsets = [0, 96], sizes = [8, 32], strides = [1, 1]} : vector<8x128xf32> to vector<8x32xf32>
    %377 = math.tanh %376 : vector<8x32xf32>
    %378 = vector.extract_strided_slice %375 {offsets = [0, 0], sizes = [8, 32], strides = [1, 1]} : vector<8x96xf32> to vector<8x32xf32>
    %379 = vector.extract_strided_slice %375 {offsets = [0, 32], sizes = [8, 32], strides = [1, 1]} : vector<8x96xf32> to vector<8x32xf32>
    %380 = vector.extract_strided_slice %375 {offsets = [0, 64], sizes = [8, 32], strides = [1, 1]} : vector<8x96xf32> to vector<8x32xf32>
    %381 = arith.mulf %379, %361 : vector<8x32xf32>
    %382 = arith.mulf %378, %377 : vector<8x32xf32>
    %383 = arith.addf %381, %382 : vector<8x32xf32>
    %384 = math.tanh %383 : vector<8x32xf32>
    %385 = arith.mulf %380, %384 : vector<8x32xf32>
    %c7_i32_110 = arith.constant 7 : i32
    %386 = arith.index_cast %c7_i32_110 : i32 to index
    %c0_111 = arith.constant 0 : index
    %c0_112 = arith.constant 0 : index
    %387 = vector.load %arg11[%386, %c0_111, %c0_112] : memref<8x8x128xf32, #tpu.memory_space<vmem>>, vector<1x8x128xf32>
    %388 = vector.shape_cast %387 : vector<1x8x128xf32> to vector<8x128xf32>
    %389 = arith.truncf %385 : vector<8x32xf32> to vector<8x32xbf16>
    %cst_113 = arith.constant dense<0.000000e+00> : vector<8x128xf32>
    %390 = tpu.matmul %389, %220, %cst_113 {dimension_numbers = #tpu.dot_dimension_numbers<[1], [0], [0], [1], [0, 0, 1, 1], [], []>} : vector<8x32xbf16>, vector<32x128xbf16>, vector<8x128xf32> -> vector<8x128xf32>
    %391 = arith.addf %388, %390 : vector<8x128xf32>
    %392 = vector.extract_strided_slice %391 {offsets = [0, 0], sizes = [8, 96], strides = [1, 1]} : vector<8x128xf32> to vector<8x96xf32>
    %393 = arith.negf %392 : vector<8x96xf32>
    %394 = math.exp %393 : vector<8x96xf32>
    %cst_114 = arith.constant 1.000000e+00 : f32
    %395 = vector.broadcast %cst_114 : f32 to vector<8x96xf32>
    %396 = arith.addf %395, %394 : vector<8x96xf32>
    %397 = arith.divf %395, %396 : vector<8x96xf32>
    %398 = vector.extract_strided_slice %391 {offsets = [0, 96], sizes = [8, 32], strides = [1, 1]} : vector<8x128xf32> to vector<8x32xf32>
    %399 = math.tanh %398 : vector<8x32xf32>
    %400 = vector.extract_strided_slice %397 {offsets = [0, 0], sizes = [8, 32], strides = [1, 1]} : vector<8x96xf32> to vector<8x32xf32>
    %401 = vector.extract_strided_slice %397 {offsets = [0, 32], sizes = [8, 32], strides = [1, 1]} : vector<8x96xf32> to vector<8x32xf32>
    %402 = vector.extract_strided_slice %397 {offsets = [0, 64], sizes = [8, 32], strides = [1, 1]} : vector<8x96xf32> to vector<8x32xf32>
    %403 = arith.mulf %401, %383 : vector<8x32xf32>
    %404 = arith.mulf %400, %399 : vector<8x32xf32>
    %405 = arith.addf %403, %404 : vector<8x32xf32>
    %406 = math.tanh %405 : vector<8x32xf32>
    %407 = arith.mulf %402, %406 : vector<8x32xf32>
    %c8_i32_115 = arith.constant 8 : i32
    %408 = arith.truncf %407 : vector<8x32xf32> to vector<8x32xbf16>
    %c0_116 = arith.constant 0 : index
    %c0_117 = arith.constant 0 : index
    %409 = vector.load %arg8[%c0_116, %c0_117] : memref<32x128xbf16, #tpu.memory_space<vmem>>, vector<32x128xbf16>
    %cst_118 = arith.constant dense<0.000000e+00> : vector<8x128xf32>
    %410 = tpu.matmul %408, %409, %cst_118 {dimension_numbers = #tpu.dot_dimension_numbers<[1], [0], [0], [1], [0, 0, 1, 1], [], []>} : vector<8x32xbf16>, vector<32x128xbf16>, vector<8x128xf32> -> vector<8x128xf32>
    %c0_119 = arith.constant 0 : index
    %c0_120 = arith.constant 0 : index
    %411 = vector.load %arg9[%c0_119, %c0_120] : memref<1x128xf32, #tpu.memory_space<vmem>>, vector<1x128xf32>
    %412 = vector.broadcast %411 : vector<1x128xf32> to vector<8x128xf32>
    %413 = arith.addf %410, %412 : vector<8x128xf32>
    %c0_121 = arith.constant 0 : index
    %c0_122 = arith.constant 0 : index
    %414 = vector.load %arg10[%c0_121, %c0_122] : memref<8x128xf32, #tpu.memory_space<vmem>>, vector<8x128xf32>
    tpu.vector_store %arg10[%c0_121, %c0_122], %413 {strides = array<i32>} : memref<8x128xf32, #tpu.memory_space<vmem>>, vector<8x128xf32>,
    return
  }
  func.func @transform_0(%arg0: i32) -> (i32, i32) {
    %c0_i32 = arith.constant 0 : i32
    %c0_i32_0 = arith.constant 0 : i32
    %c0_i32_1 = arith.constant 0 : i32
    return %c0_i32, %c0_i32_0 : i32, i32
  }
  func.func @transform_1(%arg0: i32) -> (i32, i32) {
    %c0_i32 = arith.constant 0 : i32
    %c0_i32_0 = arith.constant 0 : i32
    %c0_i32_1 = arith.constant 0 : i32
    return %c0_i32, %c0_i32_0 : i32, i32
  }
  func.func @transform_2(%arg0: i32) -> (i32, i32) {
    %c0_i32 = arith.constant 0 : i32
    %c0_i32_0 = arith.constant 0 : i32
    %c0_i32_1 = arith.constant 0 : i32
    return %c0_i32, %c0_i32_0 : i32, i32
  }
  func.func @transform_3(%arg0: i32) -> (i32, i32) {
    %c0_i32 = arith.constant 0 : i32
    %c0_i32_0 = arith.constant 0 : i32
    %c0_i32_1 = arith.constant 0 : i32
    return %c0_i32, %c0_i32_0 : i32, i32
  }
  func.func @transform_4(%arg0: i32) -> (i32, i32) {
    %c0_i32 = arith.constant 0 : i32
    %c0_i32_0 = arith.constant 0 : i32
    %c0_i32_1 = arith.constant 0 : i32
    return %c0_i32, %c0_i32_0 : i32, i32
  }
  func.func @transform_5(%arg0: i32) -> (i32, i32) {
    %c0_i32 = arith.constant 0 : i32
    %c0_i32_0 = arith.constant 0 : i32
    %c0_i32_1 = arith.constant 0 : i32
    return %c0_i32, %c0_i32_0 : i32, i32
  }
  func.func @transform_6(%arg0: i32) -> (i32, i32) {
    %c0_i32 = arith.constant 0 : i32
    %c0_i32_0 = arith.constant 0 : i32
    %c0_i32_1 = arith.constant 0 : i32
    return %c0_i32, %c0_i32_0 : i32, i32
  }
  func.func @transform_7(%arg0: i32) -> (i32, i32) {
    %c0_i32 = arith.constant 0 : i32
    %c0_i32_0 = arith.constant 0 : i32
    %c0_i32_1 = arith.constant 0 : i32
    return %c0_i32, %c0_i32_0 : i32, i32
  }
  func.func @transform_8(%arg0: i32) -> (i32, i32) {
    %c0_i32 = arith.constant 0 : i32
    %c0_i32_0 = arith.constant 0 : i32
    %c0_i32_1 = arith.constant 0 : i32
    return %c0_i32, %c0_i32_0 : i32, i32
  }
  func.func @transform_9(%arg0: i32) -> (i32, i32) {
    %c0_i32 = arith.constant 0 : i32
    %c0_i32_0 = arith.constant 0 : i32
    %c0_i32_1 = arith.constant 0 : i32
    return %c0_i32, %c0_i32_0 : i32, i32
  }
}

</mosaic_0001>

<llo_original>
// kernel: rnn_forward.1
$region0: #{rnn_forward.1}
  #allocation0 [shape = 'u32[]', space=smem, size = 0x4, offset = 0x4, fixed_abs, tag = 'smem constant byte address 0x4 - core index']
  #allocation1 [shape = 'u32[72,128]{1,0:T(1,128)}', space=vmem, size = 0x9000, scoped, tag = 'internal scratch']
  #allocation2 [shape = 'f32[8,8,128]{2,1,0:T(8,128)}', space=vmem, size = 0x8000, scoped, tag = 'scratch operand']
  #allocation3 [shape = 'f32[8,8,32]{2,1,0:T(8,128)}', space=vmem, size = 0x8000, scoped, tag = 'scratch operand']
  %s0 = inlined_call_operand.vmem [shape: bf16[64,32], index: 0, kind: input, shape index: {}]
  %s1 = inlined_call_operand.vmem [shape: bf16[32,128], index: 1, kind: input, shape index: {}]
  %s2 = inlined_call_operand.vmem [shape: bf16[32,128], index: 2, kind: input, shape index: {}]
  %s3 = inlined_call_operand.vmem [shape: f32[1,128], index: 3, kind: input, shape index: {}]
  %s4 = inlined_call_operand.vmem [shape: bf16[32,128], index: 4, kind: input, shape index: {}]
  %s5 = inlined_call_operand.vmem [shape: bf16[32,128], index: 5, kind: input, shape index: {}]
  %s6 = inlined_call_operand.vmem [shape: f32[1,128], index: 6, kind: input, shape index: {}]
  %s7 = inlined_call_operand.vmem [shape: bf16[32,128], index: 7, kind: input, shape index: {}]
  %s8 = inlined_call_operand.vmem [shape: f32[1,128], index: 8, kind: input, shape index: {}]
  %s9 = inlined_call_operand.vmem [shape: f32[8,128], index: 9, kind: output, shape index: {}]
  %s10 = sld [smem:[#allocation0]]
  $region46: #{rnn_forward.1} parent=0
    _
  %s12 = ssub.s32 1, %s10
  %s13 = scalar_select 0, %s12, %s10
  // Predicated region
  $region2: #{rnn_forward.1} parent=0 // pred_check
    _
  $region3: #{rnn_forward.1} parent=0 // pred_check_branch
    %15 = sbr.rel (0) target = $region5
  $region4: #{rnn_forward.1} parent=0 // pred_region
    _
  $region5: #{rnn_forward.1} parent=0 // pred_fallthru
    _
  // Predicated region
  $region6: #{rnn_forward.1} parent=0 // pred_check
    _
  $region7: #{rnn_forward.1} parent=0 // pred_check_branch
    %17 = sbr.rel (0) target = $region9
  $region8: #{rnn_forward.1} parent=0 // pred_region
    _
  $region9: #{rnn_forward.1} parent=0 // pred_fallthru
    _
  // Predicated region
  $region10: #{rnn_forward.1} parent=0 // pred_check
    _
  $region11: #{rnn_forward.1} parent=0 // pred_check_branch
    %19 = sbr.rel (0) target = $region13
  $region12: #{rnn_forward.1} parent=0 // pred_region
    _
  $region13: #{rnn_forward.1} parent=0 // pred_fallthru
    _
  // Predicated region
  $region14: #{rnn_forward.1} parent=0 // pred_check
    _
  $region15: #{rnn_forward.1} parent=0 // pred_check_branch
    %21 = sbr.rel (0) target = $region17
  $region16: #{rnn_forward.1} parent=0 // pred_region
    _
  $region17: #{rnn_forward.1} parent=0 // pred_fallthru
    _
  // Predicated region
  $region18: #{rnn_forward.1} parent=0 // pred_check
    _
  $region19: #{rnn_forward.1} parent=0 // pred_check_branch
    %23 = sbr.rel (0) target = $region21
  $region20: #{rnn_forward.1} parent=0 // pred_region
    _
  $region21: #{rnn_forward.1} parent=0 // pred_fallthru
    _
  // Predicated region
  $region22: #{rnn_forward.1} parent=0 // pred_check
    _
  $region23: #{rnn_forward.1} parent=0 // pred_check_branch
    %25 = sbr.rel (0) target = $region25
  $region24: #{rnn_forward.1} parent=0 // pred_region
    _
  $region25: #{rnn_forward.1} parent=0 // pred_fallthru
    _
  // Predicated region
  $region26: #{rnn_forward.1} parent=0 // pred_check
    _
  $region27: #{rnn_forward.1} parent=0 // pred_check_branch
    %27 = sbr.rel (0) target = $region29
  $region28: #{rnn_forward.1} parent=0 // pred_region
    _
  $region29: #{rnn_forward.1} parent=0 // pred_fallthru
    _
  // Predicated region
  $region30: #{rnn_forward.1} parent=0 // pred_check
    _
  $region31: #{rnn_forward.1} parent=0 // pred_check_branch
    %29 = sbr.rel (0) target = $region33
  $region32: #{rnn_forward.1} parent=0 // pred_region
    _
  $region33: #{rnn_forward.1} parent=0 // pred_fallthru
    _
  // Predicated region
  $region34: #{rnn_forward.1} parent=0 // pred_check
    _
  $region35: #{rnn_forward.1} parent=0 // pred_check_branch
    %31 = sbr.rel (0) target = $region37
  $region36: #{rnn_forward.1} parent=0 // pred_region
    _
  $region37: #{rnn_forward.1} parent=0 // pred_fallthru
    _
  %v33 = vld [vmem:[%s1] sm:$0xf]
  %v34 = vld [vmem:[%s1 + $0x4] sm:$0xf]
  %v35 = vld [vmem:[%s1 + $0x8] sm:$0xf]
  %v36 = vld [vmem:[%s1 + $0xc] sm:$0xf]
  %v37 = vld [vmem:[%s2] sm:$0xf]
  %v38 = vld [vmem:[%s2 + $0x4] sm:$0xf]
  %v39 = vld [vmem:[%s2 + $0x8] sm:$0xf]
  %v40 = vld [vmem:[%s2 + $0xc] sm:$0xf]
  %v41 = vld [vmem:[%s3] sm:$0x1]
  %v42 = vld [vmem:[%s0] sm:$0xf]
  %v43 = vld [vmem:[%s0 + $0x4] sm:$0xf]
  %v44 = vld [vmem:[%s0 + $0x8] sm:$0xf]
  %v45 = vld [vmem:[%s0 + $0xc] sm:$0xf]
  %v46 = vld [vmem:[%s0 + $0x10] sm:$0xf]
  %v47 = vld [vmem:[%s0 + $0x14] sm:$0xf]
  %v48 = vld [vmem:[%s0 + $0x18] sm:$0xf]
  %v49 = vld [vmem:[%s0 + $0x1c] sm:$0xf]
  %v51 = vperm.slane %v41, 0
  %v61 = vunpack.c.l.b16 %v42
  %v62 = vunpack.c.l.b16 %v43
  %v63 = vunpack.c.l.b16 %v44
  %v64 = vunpack.c.l.b16 %v45
  %v65 = vunpack.c.l.b16 %v46
  %v66 = vunpack.c.l.b16 %v47
  %v67 = vunpack.c.l.b16 %v48
  %v68 = vunpack.c.l.b16 %v49
  %v69 = vpack.c.b16 %v62, %v61
  %v70 = vpack.c.b16 %v64, %v63
  %v71 = vpack.c.b16 %v66, %v65
  %v72 = vpack.c.b16 %v68, %v67
  %v77 = vunpack.c.l.b16 %v33
  %v78 = vunpack.c.l.b16 %v34
  %v79 = vunpack.c.l.b16 %v35
  %v80 = vunpack.c.l.b16 %v36
  %v81 = vpack.c.b16 %v78, %v77
  %v82 = vpack.c.b16 %v80, %v79
  %vm85 = vcmask 261120
  %v87 = vsel %vm85, %v69, 0
  %v90 = vsel %vm85, %v70, 0
  %v93 = vsel %vm85, %v71, 0
  %v96 = vsel %vm85, %v72, 0
  %98 = vmatpush.bf16.msra.mxu0 0
  %99 = vmatpush.bf16.msra.mxu0 0
  %100 = vmatpush.bf16.msra.mxu0 0
  %101 = vmatpush.bf16.msra.mxu0 0
  %102 = vmatpush.bf16.msra.mxu0 0
  %103 = vmatpush.bf16.msra.mxu0 0
  %104 = vmatpush.bf16.msra.mxu0 %v82
  %105 = vmatpush.bf16.msra.mxu0 %v81
  %106 = vmatmul.bf16.gmra.mxu0 %v87
  %v107 = vpop.f32.mrf.mxu0
  %v108 = vadd.f32 %v51, %v107
  %v109 = vpop.f32.mrf.mxu0
  %v110 = vadd.f32 %v51, %v109
  %111 = vmatmul.bf16.gmra.mxu0 %v90
  %v112 = vpop.f32.mrf.mxu0
  %v113 = vadd.f32 %v51, %v112
  %v114 = vpop.f32.mrf.mxu0
  %v115 = vadd.f32 %v51, %v114
  %116 = vmatmul.bf16.gmra.mxu0 %v93
  %v117 = vpop.f32.mrf.mxu0
  %v118 = vadd.f32 %v51, %v117
  %v119 = vpop.f32.mrf.mxu0
  %v120 = vadd.f32 %v51, %v119
  %121 = vmatmul.bf16.gmra.mxu0 %v96
  %v122 = vpop.f32.mrf.mxu0
  %v123 = vadd.f32 %v51, %v122
  %v124 = vpop.f32.mrf.mxu0
  %v125 = vadd.f32 %v51, %v124
  %126 = vdwg.mxu0
  %127 = vst [vmem:[#allocation2] sm:$0xff] %v108
  %128 = vst [vmem:[#allocation2 + $0x8] sm:$0xff] %v110
  %129 = vst [vmem:[#allocation2 + $0x10] sm:$0xff] %v113
  %130 = vst [vmem:[#allocation2 + $0x18] sm:$0xff] %v115
  %131 = vst [vmem:[#allocation2 + $0x20] sm:$0xff] %v118
  %132 = vst [vmem:[#allocation2 + $0x28] sm:$0xff] %v120
  %133 = vst [vmem:[#allocation2 + $0x30] sm:$0xff] %v123
  %134 = vst [vmem:[#allocation2 + $0x38] sm:$0xff] %v125
  %v135 = vld [vmem:[#allocation2] sm:$0xff]
  %v140 = vunpack.c.l.b16 %v37
  %v141 = vunpack.c.l.b16 %v38
  %v142 = vunpack.c.l.b16 %v39
  %v143 = vunpack.c.l.b16 %v40
  %v144 = vpack.c.b16 %v141, %v140
  %v145 = vpack.c.b16 %v143, %v142
  %v149 = vsel %vm85, 0, 0
  %151 = vmatpush.bf16.msra.mxu0 0
  %152 = vmatpush.bf16.msra.mxu0 0
  %153 = vmatpush.bf16.msra.mxu0 0
  %154 = vmatpush.bf16.msra.mxu0 0
  %155 = vmatpush.bf16.msra.mxu0 0
  %156 = vmatpush.bf16.msra.mxu0 0
  %157 = vmatpush.bf16.msra.mxu0 %v145
  %158 = vmatpush.bf16.msra.mxu0 %v144
  %159 = vmatmul.bf16.gmra.mxu0 %v149
  %v160 = vpop.f32.mrf.mxu0
  %v161 = vadd.f32 0.0, %v160
  %v162 = vpop.f32.mrf.mxu0
  %163 = vdwg.mxu0
  %v164 = vadd.f32 %v135, %v161
  %v165 = vxor.u32 %v164, 2147483648
  %v166 = vmul.f32 %v165, 1.442695
  %v167 = vpow.pop %v166
  %v168 = vadd.f32 %v167, 1.0
  %v169 = vrcp.pop %v168
  %v170 = vmul.f32 %v168, %v169
  %v171 = vsub.f32 1.0, %v170
  %v172 = vmul.f32 %v169, %v171
  %v173 = vadd.f32 %v169, %v172
  %vm174 = vweird.f32 %v168
  %vm175 = vweird.f32 %v169
  %vm176 = vmor %vm174, %vm175
  %v177 = vsel %vm176, %v169, %v173
  %v178 = vand.u32 2147483647, %v168
  %vm179 = vcmp.eq.f32.partialorder %v178, 8.507059e+37
  %v180 = vand.u32 %v168, 2147483648
  %v181 = vor.u32 1.1754944e-38, %v180
  %v182 = vsel %vm179, %v181, %v177
  %v183 = vmul.f32 1.0, %v182
  %v184 = vtanh.pop %v164
  %v185 = vmul.f32 %v183, 0.0
  %187 = vrot.lane.b32.xlu0 %v184, 32
  %v188 = vpop.permute.xlu0 %187
  %v190 = vmul.f32 %v183, %v188
  %192 = vrot.lane.b32.xlu0 %v190, 32
  %v193 = vpop.permute.xlu0 %192
  %v195 = vadd.f32 %v185, %v193
  %v196 = vtanh.pop %v195
  %198 = vrot.lane.b32.xlu0 %v196, 32
  %v199 = vpop.permute.xlu0 %198
  %v201 = vmul.f32 %v183, %v199
  %203 = vrot.lane.b32.xlu0 %v201, 64
  %v204 = vpop.permute.xlu0 %203
  %206 = vst.msk [vmem:[#allocation3] sm:$0xff] %vm85, %v204
  %s207 = scalar_lea.vmem [#allocation2], 8
  %v208 = vld [vmem:[%s207] sm:$0xff]
  %v209 = vpack.c.bf16 %v201, %v201
  %211 = vrot.lane.b32.xlu0 %v209, 64
  %v212 = vpop.permute.xlu0 %211
  %v214 = vsel %vm85, %v212, 0
  %216 = vmatpush.bf16.msra.mxu0 0
  %217 = vmatpush.bf16.msra.mxu0 0
  %218 = vmatpush.bf16.msra.mxu0 0
  %219 = vmatpush.bf16.msra.mxu0 0
  %220 = vmatpush.bf16.msra.mxu0 0
  %221 = vmatpush.bf16.msra.mxu0 0
  %222 = vmatpush.bf16.msra.mxu0 %v145
  %223 = vmatpush.bf16.msra.mxu0 %v144
  %224 = vmatmul.bf16.gmra.mxu0 %v214
  %v225 = vpop.f32.mrf.mxu0
  %v226 = vadd.f32 0.0, %v225
  %v227 = vpop.f32.mrf.mxu0
  %228 = vdwg.mxu0
  %v229 = vadd.f32 %v208, %v226
  %v230 = vxor.u32 %v229, 2147483648
  %v231 = vmul.f32 %v230, 1.442695
  %v232 = vpow.pop %v231
  %v233 = vadd.f32 %v232, 1.0
  %v234 = vrcp.pop %v233
  %v235 = vmul.f32 %v233, %v234
  %v236 = vsub.f32 1.0, %v235
  %v237 = vmul.f32 %v234, %v236
  %v238 = vadd.f32 %v234, %v237
  %vm239 = vweird.f32 %v233
  %vm240 = vweird.f32 %v234
  %vm241 = vmor %vm239, %vm240
  %v242 = vsel %vm241, %v234, %v238
  %v243 = vand.u32 2147483647, %v233
  %vm244 = vcmp.eq.f32.partialorder %v243, 8.507059e+37
  %v245 = vand.u32 %v233, 2147483648
  %v246 = vor.u32 1.1754944e-38, %v245
  %v247 = vsel %vm244, %v246, %v242
  %v248 = vmul.f32 1.0, %v247
  %v249 = vtanh.pop %v229
  %v250 = vmul.f32 %v248, %v195
  %252 = vrot.lane.b32.xlu0 %v249, 32
  %v253 = vpop.permute.xlu0 %252
  %v255 = vmul.f32 %v248, %v253
  %257 = vrot.lane.b32.xlu0 %v255, 32
  %v258 = vpop.permute.xlu0 %257
  %v260 = vadd.f32 %v250, %v258
  %v261 = vtanh.pop %v260
  %263 = vrot.lane.b32.xlu0 %v261, 32
  %v264 = vpop.permute.xlu0 %263
  %v266 = vmul.f32 %v248, %v264
  %268 = vrot.lane.b32.xlu0 %v266, 64
  %v269 = vpop.permute.xlu0 %268
  %s271 = scalar_lea.vmem [#allocation3], 8
  %272 = vst.msk [vmem:[%s271] sm:$0xff] %vm85, %v269
  %s273 = scalar_lea.vmem [#allocation2], 16
  %v274 = vld [vmem:[%s273] sm:$0xff]
  %v275 = vpack.c.bf16 %v266, %v266
  %277 = vrot.lane.b32.xlu0 %v275, 64
  %v278 = vpop.permute.xlu0 %277
  %v280 = vsel %vm85, %v278, 0
  %282 = vmatpush.bf16.msra.mxu0 0
  %283 = vmatpush.bf16.msra.mxu0 0
  %284 = vmatpush.bf16.msra.mxu0 0
  %285 = vmatpush.bf16.msra.mxu0 0
  %286 = vmatpush.bf16.msra.mxu0 0
  %287 = vmatpush.bf16.msra.mxu0 0
  %288 = vmatpush.bf16.msra.mxu0 %v145
  %289 = vmatpush.bf16.msra.mxu0 %v144
  %290 = vmatmul.bf16.gmra.mxu0 %v280
  %v291 = vpop.f32.mrf.mxu0
  %v292 = vadd.f32 0.0, %v291
  %v293 = vpop.f32.mrf.mxu0
  %294 = vdwg.mxu0
  %v295 = vadd.f32 %v274, %v292
  %v296 = vxor.u32 %v295, 2147483648
  %v297 = vmul.f32 %v296, 1.442695
  %v298 = vpow.pop %v297
  %v299 = vadd.f32 %v298, 1.0
  %v300 = vrcp.pop %v299
  %v301 = vmul.f32 %v299, %v300
  %v302 = vsub.f32 1.0, %v301
  %v303 = vmul.f32 %v300, %v302
  %v304 = vadd.f32 %v300, %v303
  %vm305 = vweird.f32 %v299
  %vm306 = vweird.f32 %v300
  %vm307 = vmor %vm305, %vm306
  %v308 = vsel %vm307, %v300, %v304
  %v309 = vand.u32 2147483647, %v299
  %vm310 = vcmp.eq.f32.partialorder %v309, 8.507059e+37
  %v311 = vand.u32 %v299, 2147483648
  %v312 = vor.u32 1.1754944e-38, %v311
  %v313 = vsel %vm310, %v312, %v308
  %v314 = vmul.f32 1.0, %v313
  %v315 = vtanh.pop %v295
  %v316 = vmul.f32 %v314, %v260
  %318 = vrot.lane.b32.xlu0 %v315, 32
  %v319 = vpop.permute.xlu0 %318
  %v321 = vmul.f32 %v314, %v319
  %323 = vrot.lane.b32.xlu0 %v321, 32
  %v324 = vpop.permute.xlu0 %323
  %v326 = vadd.f32 %v316, %v324
  %v327 = vtanh.pop %v326
  %329 = vrot.lane.b32.xlu0 %v327, 32
  %v330 = vpop.permute.xlu0 %329
  %v332 = vmul.f32 %v314, %v330
  %334 = vrot.lane.b32.xlu0 %v332, 64
  %v335 = vpop.permute.xlu0 %334
  %s337 = scalar_lea.vmem [#allocation3], 16
  %338 = vst.msk [vmem:[%s337] sm:$0xff] %vm85, %v335
  %s339 = scalar_lea.vmem [#allocation2], 24
  %v340 = vld [vmem:[%s339] sm:$0xff]
  %v341 = vpack.c.bf16 %v332, %v332
  %343 = vrot.lane.b32.xlu0 %v341, 64
  %v344 = vpop.permute.xlu0 %343
  %v346 = vsel %vm85, %v344, 0
  %348 = vmatpush.bf16.msra.mxu0 0
  %349 = vmatpush.bf16.msra.mxu0 0
  %350 = vmatpush.bf16.msra.mxu0 0
  %351 = vmatpush.bf16.msra.mxu0 0
  %352 = vmatpush.bf16.msra.mxu0 0
  %353 = vmatpush.bf16.msra.mxu0 0
  %354 = vmatpush.bf16.msra.mxu0 %v145
  %355 = vmatpush.bf16.msra.mxu0 %v144
  %356 = vmatmul.bf16.gmra.mxu0 %v346
  %v357 = vpop.f32.mrf.mxu0
  %v358 = vadd.f32 0.0, %v357
  %v359 = vpop.f32.mrf.mxu0
  %360 = vdwg.mxu0
  %v361 = vadd.f32 %v340, %v358
  %v362 = vxor.u32 %v361, 2147483648
  %v363 = vmul.f32 %v362, 1.442695
  %v364 = vpow.pop %v363
  %v365 = vadd.f32 %v364, 1.0
  %v366 = vrcp.pop %v365
  %v367 = vmul.f32 %v365, %v366
  %v368 = vsub.f32 1.0, %v367
  %v369 = vmul.f32 %v366, %v368
  %v370 = vadd.f32 %v366, %v369
  %vm371 = vweird.f32 %v365
  %vm372 = vweird.f32 %v366
  %vm373 = vmor %vm371, %vm372
  %v374 = vsel %vm373, %v366, %v370
  %v375 = vand.u32 2147483647, %v365
  %vm376 = vcmp.eq.f32.partialorder %v375, 8.507059e+37
  %v377 = vand.u32 %v365, 2147483648
  %v378 = vor.u32 1.1754944e-38, %v377
  %v379 = vsel %vm376, %v378, %v374
  %v380 = vmul.f32 1.0, %v379
  %v381 = vtanh.pop %v361
  %v382 = vmul.f32 %v380, %v326
  %384 = vrot.lane.b32.xlu0 %v381, 32
  %v385 = vpop.permute.xlu0 %384
  %v387 = vmul.f32 %v380, %v385
  %389 = vrot.lane.b32.xlu0 %v387, 32
  %v390 = vpop.permute.xlu0 %389
  %v392 = vadd.f32 %v382, %v390
  %v393 = vtanh.pop %v392
  %395 = vrot.lane.b32.xlu0 %v393, 32
  %v396 = vpop.permute.xlu0 %395
  %v398 = vmul.f32 %v380, %v396
  %400 = vrot.lane.b32.xlu0 %v398, 64
  %v401 = vpop.permute.xlu0 %400
  %s403 = scalar_lea.vmem [#allocation3], 24
  %404 = vst.msk [vmem:[%s403] sm:$0xff] %vm85, %v401
  %s405 = scalar_lea.vmem [#allocation2], 32
  %v406 = vld [vmem:[%s405] sm:$0xff]
  %v407 = vpack.c.bf16 %v398, %v398
  %409 = vrot.lane.b32.xlu0 %v407, 64
  %v410 = vpop.permute.xlu0 %409
  %v412 = vsel %vm85, %v410, 0
  %414 = vmatpush.bf16.msra.mxu0 0
  %415 = vmatpush.bf16.msra.mxu0 0
  %416 = vmatpush.bf16.msra.mxu0 0
  %417 = vmatpush.bf16.msra.mxu0 0
  %418 = vmatpush.bf16.msra.mxu0 0
  %419 = vmatpush.bf16.msra.mxu0 0
  %420 = vmatpush.bf16.msra.mxu0 %v145
  %421 = vmatpush.bf16.msra.mxu0 %v144
  %422 = vmatmul.bf16.gmra.mxu0 %v412
  %v423 = vpop.f32.mrf.mxu0
  %v424 = vadd.f32 0.0, %v423
  %v425 = vpop.f32.mrf.mxu0
  %426 = vdwg.mxu0
  %v427 = vadd.f32 %v406, %v424
  %v428 = vxor.u32 %v427, 2147483648
  %v429 = vmul.f32 %v428, 1.442695
  %v430 = vpow.pop %v429
  %v431 = vadd.f32 %v430, 1.0
  %v432 = vrcp.pop %v431
  %v433 = vmul.f32 %v431, %v432
  %v434 = vsub.f32 1.0, %v433
  %v435 = vmul.f32 %v432, %v434
  %v436 = vadd.f32 %v432, %v435
  %vm437 = vweird.f32 %v431
  %vm438 = vweird.f32 %v432
  %vm439 = vmor %vm437, %vm438
  %v440 = vsel %vm439, %v432, %v436
  %v441 = vand.u32 2147483647, %v431
  %vm442 = vcmp.eq.f32.partialorder %v441, 8.507059e+37
  %v443 = vand.u32 %v431, 2147483648
  %v444 = vor.u32 1.1754944e-38, %v443
  %v445 = vsel %vm442, %v444, %v440
  %v446 = vmul.f32 1.0, %v445
  %v447 = vtanh.pop %v427
  %v448 = vmul.f32 %v446, %v392
  %450 = vrot.lane.b32.xlu0 %v447, 32
  %v451 = vpop.permute.xlu0 %450
  %v453 = vmul.f32 %v446, %v451
  %455 = vrot.lane.b32.xlu0 %v453, 32
  %v456 = vpop.permute.xlu0 %455
  %v458 = vadd.f32 %v448, %v456
  %v459 = vtanh.pop %v458
  %461 = vrot.lane.b32.xlu0 %v459, 32
  %v462 = vpop.permute.xlu0 %461
  %v464 = vmul.f32 %v446, %v462
  %466 = vrot.lane.b32.xlu0 %v464, 64
  %v467 = vpop.permute.xlu0 %466
  %s469 = scalar_lea.vmem [#allocation3], 32
  %470 = vst.msk [vmem:[%s469] sm:$0xff] %vm85, %v467
  %s471 = scalar_lea.vmem [#allocation2], 40
  %v472 = vld [vmem:[%s471] sm:$0xff]
  %v473 = vpack.c.bf16 %v464, %v464
  %475 = vrot.lane.b32.xlu0 %v473, 64
  %v476 = vpop.permute.xlu0 %475
  %v478 = vsel %vm85, %v476, 0
  %480 = vmatpush.bf16.msra.mxu0 0
  %481 = vmatpush.bf16.msra.mxu0 0
  %482 = vmatpush.bf16.msra.mxu0 0
  %483 = vmatpush.bf16.msra.mxu0 0
  %484 = vmatpush.bf16.msra.mxu0 0
  %485 = vmatpush.bf16.msra.mxu0 0
  %486 = vmatpush.bf16.msra.mxu0 %v145
  %487 = vmatpush.bf16.msra.mxu0 %v144
  %488 = vmatmul.bf16.gmra.mxu0 %v478
  %v489 = vpop.f32.mrf.mxu0
  %v490 = vadd.f32 0.0, %v489
  %v491 = vpop.f32.mrf.mxu0
  %492 = vdwg.mxu0
  %v493 = vadd.f32 %v472, %v490
  %v494 = vxor.u32 %v493, 2147483648
  %v495 = vmul.f32 %v494, 1.442695
  %v496 = vpow.pop %v495
  %v497 = vadd.f32 %v496, 1.0
  %v498 = vrcp.pop %v497
  %v499 = vmul.f32 %v497, %v498
  %v500 = vsub.f32 1.0, %v499
  %v501 = vmul.f32 %v498, %v500
  %v502 = vadd.f32 %v498, %v501
  %vm503 = vweird.f32 %v497
  %vm504 = vweird.f32 %v498
  %vm505 = vmor %vm503, %vm504
  %v506 = vsel %vm505, %v498, %v502
  %v507 = vand.u32 2147483647, %v497
  %vm508 = vcmp.eq.f32.partialorder %v507, 8.507059e+37
  %v509 = vand.u32 %v497, 2147483648
  %v510 = vor.u32 1.1754944e-38, %v509
  %v511 = vsel %vm508, %v510, %v506
  %v512 = vmul.f32 1.0, %v511
  %v513 = vtanh.pop %v493
  %v514 = vmul.f32 %v512, %v458
  %516 = vrot.lane.b32.xlu0 %v513, 32
  %v517 = vpop.permute.xlu0 %516
  %v519 = vmul.f32 %v512, %v517
  %521 = vrot.lane.b32.xlu0 %v519, 32
  %v522 = vpop.permute.xlu0 %521
  %v524 = vadd.f32 %v514, %v522
  %v525 = vtanh.pop %v524
  %527 = vrot.lane.b32.xlu0 %v525, 32
  %v528 = vpop.permute.xlu0 %527
  %v530 = vmul.f32 %v512, %v528
  %532 = vrot.lane.b32.xlu0 %v530, 64
  %v533 = vpop.permute.xlu0 %532
  %s535 = scalar_lea.vmem [#allocation3], 40
  %536 = vst.msk [vmem:[%s535] sm:$0xff] %vm85, %v533
  %s537 = scalar_lea.vmem [#allocation2], 48
  %v538 = vld [vmem:[%s537] sm:$0xff]
  %v539 = vpack.c.bf16 %v530, %v530
  %541 = vrot.lane.b32.xlu0 %v539, 64
  %v542 = vpop.permute.xlu0 %541
  %v544 = vsel %vm85, %v542, 0
  %546 = vmatpush.bf16.msra.mxu0 0
  %547 = vmatpush.bf16.msra.mxu0 0
  %548 = vmatpush.bf16.msra.mxu0 0
  %549 = vmatpush.bf16.msra.mxu0 0
  %550 = vmatpush.bf16.msra.mxu0 0
  %551 = vmatpush.bf16.msra.mxu0 0
  %552 = vmatpush.bf16.msra.mxu0 %v145
  %553 = vmatpush.bf16.msra.mxu0 %v144
  %554 = vmatmul.bf16.gmra.mxu0 %v544
  %v555 = vpop.f32.mrf.mxu0
  %v556 = vadd.f32 0.0, %v555
  %v557 = vpop.f32.mrf.mxu0
  %558 = vdwg.mxu0
  %v559 = vadd.f32 %v538, %v556
  %v560 = vxor.u32 %v559, 2147483648
  %v561 = vmul.f32 %v560, 1.442695
  %v562 = vpow.pop %v561
  %v563 = vadd.f32 %v562, 1.0
  %v564 = vrcp.pop %v563
  %v565 = vmul.f32 %v563, %v564
  %v566 = vsub.f32 1.0, %v565
  %v567 = vmul.f32 %v564, %v566
  %v568 = vadd.f32 %v564, %v567
  %vm569 = vweird.f32 %v563
  %vm570 = vweird.f32 %v564
  %vm571 = vmor %vm569, %vm570
  %v572 = vsel %vm571, %v564, %v568
  %v573 = vand.u32 2147483647, %v563
  %vm574 = vcmp.eq.f32.partialorder %v573, 8.507059e+37
  %v575 = vand.u32 %v563, 2147483648
  %v576 = vor.u32 1.1754944e-38, %v575
  %v577 = vsel %vm574, %v576, %v572
  %v578 = vmul.f32 1.0, %v577
  %v579 = vtanh.pop %v559
  %v580 = vmul.f32 %v578, %v524
  %582 = vrot.lane.b32.xlu0 %v579, 32
  %v583 = vpop.permute.xlu0 %582
  %v585 = vmul.f32 %v578, %v583
  %587 = vrot.lane.b32.xlu0 %v585, 32
  %v588 = vpop.permute.xlu0 %587
  %v590 = vadd.f32 %v580, %v588
  %v591 = vtanh.pop %v590
  %593 = vrot.lane.b32.xlu0 %v591, 32
  %v594 = vpop.permute.xlu0 %593
  %v596 = vmul.f32 %v578, %v594
  %598 = vrot.lane.b32.xlu0 %v596, 64
  %v599 = vpop.permute.xlu0 %598
  %s601 = scalar_lea.vmem [#allocation3], 48
  %602 = vst.msk [vmem:[%s601] sm:$0xff] %vm85, %v599
  %s603 = scalar_lea.vmem [#allocation2], 56
  %v604 = vld [vmem:[%s603] sm:$0xff]
  %v605 = vpack.c.bf16 %v596, %v596
  %607 = vrot.lane.b32.xlu0 %v605, 64
  %v608 = vpop.permute.xlu0 %607
  %v610 = vsel %vm85, %v608, 0
  %612 = vmatpush.bf16.msra.mxu0 0
  %613 = vmatpush.bf16.msra.mxu0 0
  %614 = vmatpush.bf16.msra.mxu0 0
  %615 = vmatpush.bf16.msra.mxu0 0
  %616 = vmatpush.bf16.msra.mxu0 0
  %617 = vmatpush.bf16.msra.mxu0 0
  %618 = vmatpush.bf16.msra.mxu0 %v145
  %619 = vmatpush.bf16.msra.mxu0 %v144
  %620 = vmatmul.bf16.gmra.mxu0 %v610
  %v621 = vpop.f32.mrf.mxu0
  %v622 = vadd.f32 0.0, %v621
  %v623 = vpop.f32.mrf.mxu0
  %624 = vdwg.mxu0
  %v625 = vadd.f32 %v604, %v622
  %v626 = vxor.u32 %v625, 2147483648
  %v627 = vmul.f32 %v626, 1.442695
  %v628 = vpow.pop %v627
  %v629 = vadd.f32 %v628, 1.0
  %v630 = vrcp.pop %v629
  %v631 = vmul.f32 %v629, %v630
  %v632 = vsub.f32 1.0, %v631
  %v633 = vmul.f32 %v630, %v632
  %v634 = vadd.f32 %v630, %v633
  %vm635 = vweird.f32 %v629
  %vm636 = vweird.f32 %v630
  %vm637 = vmor %vm635, %vm636
  %v638 = vsel %vm637, %v630, %v634
  %v639 = vand.u32 2147483647, %v629
  %vm640 = vcmp.eq.f32.partialorder %v639, 8.507059e+37
  %v641 = vand.u32 %v629, 2147483648
  %v642 = vor.u32 1.1754944e-38, %v641
  %v643 = vsel %vm640, %v642, %v638
  %v644 = vmul.f32 1.0, %v643
  %v645 = vtanh.pop %v625
  %v646 = vmul.f32 %v644, %v590
  %648 = vrot.lane.b32.xlu0 %v645, 32
  %v649 = vpop.permute.xlu0 %648
  %v651 = vmul.f32 %v644, %v649
  %653 = vrot.lane.b32.xlu0 %v651, 32
  %v654 = vpop.permute.xlu0 %653
  %v656 = vadd.f32 %v646, %v654
  %v657 = vtanh.pop %v656
  %659 = vrot.lane.b32.xlu0 %v657, 32
  %v660 = vpop.permute.xlu0 %659
  %v662 = vmul.f32 %v644, %v660
  %664 = vrot.lane.b32.xlu0 %v662, 64
  %v665 = vpop.permute.xlu0 %664
  %s667 = scalar_lea.vmem [#allocation3], 56
  %668 = vst.msk [vmem:[%s667] sm:$0xff] %vm85, %v665
  %v669 = vld [vmem:[%s4] sm:$0xf]
  %v670 = vld [vmem:[%s4 + $0x4] sm:$0xf]
  %v671 = vld [vmem:[%s4 + $0x8] sm:$0xf]
  %v672 = vld [vmem:[%s4 + $0xc] sm:$0xf]
  %v673 = vld [vmem:[%s5] sm:$0xf]
  %v674 = vld [vmem:[%s5 + $0x4] sm:$0xf]
  %v675 = vld [vmem:[%s5 + $0x8] sm:$0xf]
  %v676 = vld [vmem:[%s5 + $0xc] sm:$0xf]
  %v677 = vld [vmem:[%s6] sm:$0x1]
  %v678 = vld [vmem:[#allocation3] sm:$0xff]
  %v679 = vld [vmem:[#allocation3 + $0x8] sm:$0xff]
  %v680 = vld [vmem:[#allocation3 + $0x10] sm:$0xff]
  %v681 = vld [vmem:[#allocation3 + $0x18] sm:$0xff]
  %v682 = vld [vmem:[#allocation3 + $0x20] sm:$0xff]
  %v683 = vld [vmem:[#allocation3 + $0x28] sm:$0xff]
  %v684 = vld [vmem:[#allocation3 + $0x30] sm:$0xff]
  %v685 = vld [vmem:[#allocation3 + $0x38] sm:$0xff]
  %v686 = vpack.c.bf16 %v679, %v678
  %v687 = vpack.c.bf16 %v681, %v680
  %v688 = vpack.c.bf16 %v683, %v682
  %v689 = vpack.c.bf16 %v685, %v684
  %v691 = vperm.slane %v677, 0
  %v697 = vunpack.c.l.b16 %v669
  %v698 = vunpack.c.l.b16 %v670
  %v699 = vunpack.c.l.b16 %v671
  %v700 = vunpack.c.l.b16 %v672
  %v701 = vpack.c.b16 %v698, %v697
  %v702 = vpack.c.b16 %v700, %v699
  %v706 = vsel %vm85, %v686, 0
  %v709 = vsel %vm85, %v687, 0
  %v712 = vsel %vm85, %v688, 0
  %v715 = vsel %vm85, %v689, 0
  %717 = vmatpush.bf16.msra.mxu0 0
  %718 = vmatpush.bf16.msra.mxu0 0
  %719 = vmatpush.bf16.msra.mxu0 0
  %720 = vmatpush.bf16.msra.mxu0 0
  %721 = vmatpush.bf16.msra.mxu0 0
  %722 = vmatpush.bf16.msra.mxu0 0
  %723 = vmatpush.bf16.msra.mxu0 %v702
  %724 = vmatpush.bf16.msra.mxu0 %v701
  %725 = vmatmul.bf16.gmra.mxu0 %v706
  %v726 = vpop.f32.mrf.mxu0
  %v727 = vadd.f32 %v691, %v726
  %v728 = vpop.f32.mrf.mxu0
  %v729 = vadd.f32 %v691, %v728
  %730 = vmatmul.bf16.gmra.mxu0 %v709
  %v731 = vpop.f32.mrf.mxu0
  %v732 = vadd.f32 %v691, %v731
  %v733 = vpop.f32.mrf.mxu0
  %v734 = vadd.f32 %v691, %v733
  %735 = vmatmul.bf16.gmra.mxu0 %v712
  %v736 = vpop.f32.mrf.mxu0
  %v737 = vadd.f32 %v691, %v736
  %v738 = vpop.f32.mrf.mxu0
  %v739 = vadd.f32 %v691, %v738
  %740 = vmatmul.bf16.gmra.mxu0 %v715
  %v741 = vpop.f32.mrf.mxu0
  %v742 = vadd.f32 %v691, %v741
  %v743 = vpop.f32.mrf.mxu0
  %v744 = vadd.f32 %v691, %v743
  %745 = vdwg.mxu0
  %746 = vst [vmem:[#allocation2] sm:$0xff] %v727
  %747 = vst [vmem:[#allocation2 + $0x8] sm:$0xff] %v729
  %748 = vst [vmem:[#allocation2 + $0x10] sm:$0xff] %v732
  %749 = vst [vmem:[#allocation2 + $0x18] sm:$0xff] %v734
  %750 = vst [vmem:[#allocation2 + $0x20] sm:$0xff] %v737
  %751 = vst [vmem:[#allocation2 + $0x28] sm:$0xff] %v739
  %752 = vst [vmem:[#allocation2 + $0x30] sm:$0xff] %v742
  %753 = vst [vmem:[#allocation2 + $0x38] sm:$0xff] %v744
  %v754 = vld [vmem:[#allocation2] sm:$0xff]
  %v759 = vunpack.c.l.b16 %v673
  %v760 = vunpack.c.l.b16 %v674
  %v761 = vunpack.c.l.b16 %v675
  %v762 = vunpack.c.l.b16 %v676
  %v763 = vpack.c.b16 %v760, %v759
  %v764 = vpack.c.b16 %v762, %v761
  %767 = vmatpush.bf16.msra.mxu0 0
  %768 = vmatpush.bf16.msra.mxu0 0
  %769 = vmatpush.bf16.msra.mxu0 0
  %770 = vmatpush.bf16.msra.mxu0 0
  %771 = vmatpush.bf16.msra.mxu0 0
  %772 = vmatpush.bf16.msra.mxu0 0
  %773 = vmatpush.bf16.msra.mxu0 %v764
  %774 = vmatpush.bf16.msra.mxu0 %v763
  %775 = vmatmul.bf16.gmra.mxu0 %v149
  %v776 = vpop.f32.mrf.mxu0
  %v777 = vadd.f32 0.0, %v776
  %v778 = vpop.f32.mrf.mxu0
  %779 = vdwg.mxu0
  %v780 = vadd.f32 %v754, %v777
  %v781 = vxor.u32 %v780, 2147483648
  %v782 = vmul.f32 %v781, 1.442695
  %v783 = vpow.pop %v782
  %v784 = vadd.f32 %v783, 1.0
  %v785 = vrcp.pop %v784
  %v786 = vmul.f32 %v784, %v785
  %v787 = vsub.f32 1.0, %v786
  %v788 = vmul.f32 %v785, %v787
  %v789 = vadd.f32 %v785, %v788
  %vm790 = vweird.f32 %v784
  %vm791 = vweird.f32 %v785
  %vm792 = vmor %vm790, %vm791
  %v793 = vsel %vm792, %v785, %v789
  %v794 = vand.u32 2147483647, %v784
  %vm795 = vcmp.eq.f32.partialorder %v794, 8.507059e+37
  %v796 = vand.u32 %v784, 2147483648
  %v797 = vor.u32 1.1754944e-38, %v796
  %v798 = vsel %vm795, %v797, %v793
  %v799 = vmul.f32 1.0, %v798
  %v800 = vtanh.pop %v780
  %v801 = vmul.f32 %v799, 0.0
  %803 = vrot.lane.b32.xlu0 %v800, 32
  %v804 = vpop.permute.xlu0 %803
  %v806 = vmul.f32 %v799, %v804
  %808 = vrot.lane.b32.xlu0 %v806, 32
  %v809 = vpop.permute.xlu0 %808
  %v811 = vadd.f32 %v801, %v809
  %v812 = vtanh.pop %v811
  %814 = vrot.lane.b32.xlu0 %v812, 32
  %v815 = vpop.permute.xlu0 %814
  %v817 = vmul.f32 %v799, %v815
  %v818 = vld [vmem:[%s207] sm:$0xff]
  %v819 = vpack.c.bf16 %v817, %v817
  %821 = vrot.lane.b32.xlu0 %v819, 64
  %v822 = vpop.permute.xlu0 %821
  %v824 = vsel %vm85, %v822, 0
  %826 = vmatpush.bf16.msra.mxu0 0
  %827 = vmatpush.bf16.msra.mxu0 0
  %828 = vmatpush.bf16.msra.mxu0 0
  %829 = vmatpush.bf16.msra.mxu0 0
  %830 = vmatpush.bf16.msra.mxu0 0
  %831 = vmatpush.bf16.msra.mxu0 0
  %832 = vmatpush.bf16.msra.mxu0 %v764
  %833 = vmatpush.bf16.msra.mxu0 %v763
  %834 = vmatmul.bf16.gmra.mxu0 %v824
  %v835 = vpop.f32.mrf.mxu0
  %v836 = vadd.f32 0.0, %v835
  %v837 = vpop.f32.mrf.mxu0
  %838 = vdwg.mxu0
  %v839 = vadd.f32 %v818, %v836
  %v840 = vxor.u32 %v839, 2147483648
  %v841 = vmul.f32 %v840, 1.442695
  %v842 = vpow.pop %v841
  %v843 = vadd.f32 %v842, 1.0
  %v844 = vrcp.pop %v843
  %v845 = vmul.f32 %v843, %v844
  %v846 = vsub.f32 1.0, %v845
  %v847 = vmul.f32 %v844, %v846
  %v848 = vadd.f32 %v844, %v847
  %vm849 = vweird.f32 %v843
  %vm850 = vweird.f32 %v844
  %vm851 = vmor %vm849, %vm850
  %v852 = vsel %vm851, %v844, %v848
  %v853 = vand.u32 2147483647, %v843
  %vm854 = vcmp.eq.f32.partialorder %v853, 8.507059e+37
  %v855 = vand.u32 %v843, 2147483648
  %v856 = vor.u32 1.1754944e-38, %v855
  %v857 = vsel %vm854, %v856, %v852
  %v858 = vmul.f32 1.0, %v857
  %v859 = vtanh.pop %v839
  %v860 = vmul.f32 %v858, %v811
  %862 = vrot.lane.b32.xlu0 %v859, 32
  %v863 = vpop.permute.xlu0 %862
  %v865 = vmul.f32 %v858, %v863
  %867 = vrot.lane.b32.xlu0 %v865, 32
  %v868 = vpop.permute.xlu0 %867
  %v870 = vadd.f32 %v860, %v868
  %v871 = vtanh.pop %v870
  %873 = vrot.lane.b32.xlu0 %v871, 32
  %v874 = vpop.permute.xlu0 %873
  %v876 = vmul.f32 %v858, %v874
  %v877 = vld [vmem:[%s273] sm:$0xff]
  %v878 = vpack.c.bf16 %v876, %v876
  %880 = vrot.lane.b32.xlu0 %v878, 64
  %v881 = vpop.permute.xlu0 %880
  %v883 = vsel %vm85, %v881, 0
  %885 = vmatpush.bf16.msra.mxu0 0
  %886 = vmatpush.bf16.msra.mxu0 0
  %887 = vmatpush.bf16.msra.mxu0 0
  %888 = vmatpush.bf16.msra.mxu0 0
  %889 = vmatpush.bf16.msra.mxu0 0
  %890 = vmatpush.bf16.msra.mxu0 0
  %891 = vmatpush.bf16.msra.mxu0 %v764
  %892 = vmatpush.bf16.msra.mxu0 %v763
  %893 = vmatmul.bf16.gmra.mxu0 %v883
  %v894 = vpop.f32.mrf.mxu0
  %v895 = vadd.f32 0.0, %v894
  %v896 = vpop.f32.mrf.mxu0
  %897 = vdwg.mxu0
  %v898 = vadd.f32 %v877, %v895
  %v899 = vxor.u32 %v898, 2147483648
  %v900 = vmul.f32 %v899, 1.442695
  %v901 = vpow.pop %v900
  %v902 = vadd.f32 %v901, 1.0
  %v903 = vrcp.pop %v902
  %v904 = vmul.f32 %v902, %v903
  %v905 = vsub.f32 1.0, %v904
  %v906 = vmul.f32 %v903, %v905
  %v907 = vadd.f32 %v903, %v906
  %vm908 = vweird.f32 %v902
  %vm909 = vweird.f32 %v903
  %vm910 = vmor %vm908, %vm909
  %v911 = vsel %vm910, %v903, %v907
  %v912 = vand.u32 2147483647, %v902
  %vm913 = vcmp.eq.f32.partialorder %v912, 8.507059e+37
  %v914 = vand.u32 %v902, 2147483648
  %v915 = vor.u32 1.1754944e-38, %v914
  %v916 = vsel %vm913, %v915, %v911
  %v917 = vmul.f32 1.0, %v916
  %v918 = vtanh.pop %v898
  %v919 = vmul.f32 %v917, %v870
  %921 = vrot.lane.b32.xlu0 %v918, 32
  %v922 = vpop.permute.xlu0 %921
  %v924 = vmul.f32 %v917, %v922
  %926 = vrot.lane.b32.xlu0 %v924, 32
  %v927 = vpop.permute.xlu0 %926
  %v929 = vadd.f32 %v919, %v927
  %v930 = vtanh.pop %v929
  %932 = vrot.lane.b32.xlu0 %v930, 32
  %v933 = vpop.permute.xlu0 %932
  %v935 = vmul.f32 %v917, %v933
  %v936 = vld [vmem:[%s339] sm:$0xff]
  %v937 = vpack.c.bf16 %v935, %v935
  %939 = vrot.lane.b32.xlu0 %v937, 64
  %v940 = vpop.permute.xlu0 %939
  %v942 = vsel %vm85, %v940, 0
  %944 = vmatpush.bf16.msra.mxu0 0
  %945 = vmatpush.bf16.msra.mxu0 0
  %946 = vmatpush.bf16.msra.mxu0 0
  %947 = vmatpush.bf16.msra.mxu0 0
  %948 = vmatpush.bf16.msra.mxu0 0
  %949 = vmatpush.bf16.msra.mxu0 0
  %950 = vmatpush.bf16.msra.mxu0 %v764
  %951 = vmatpush.bf16.msra.mxu0 %v763
  %952 = vmatmul.bf16.gmra.mxu0 %v942
  %v953 = vpop.f32.mrf.mxu0
  %v954 = vadd.f32 0.0, %v953
  %v955 = vpop.f32.mrf.mxu0
  %956 = vdwg.mxu0
  %v957 = vadd.f32 %v936, %v954
  %v958 = vxor.u32 %v957, 2147483648
  %v959 = vmul.f32 %v958, 1.442695
  %v960 = vpow.pop %v959
  %v961 = vadd.f32 %v960, 1.0
  %v962 = vrcp.pop %v961
  %v963 = vmul.f32 %v961, %v962
  %v964 = vsub.f32 1.0, %v963
  %v965 = vmul.f32 %v962, %v964
  %v966 = vadd.f32 %v962, %v965
  %vm967 = vweird.f32 %v961
  %vm968 = vweird.f32 %v962
  %vm969 = vmor %vm967, %vm968
  %v970 = vsel %vm969, %v962, %v966
  %v971 = vand.u32 2147483647, %v961
  %vm972 = vcmp.eq.f32.partialorder %v971, 8.507059e+37
  %v973 = vand.u32 %v961, 2147483648
  %v974 = vor.u32 1.1754944e-38, %v973
  %v975 = vsel %vm972, %v974, %v970
  %v976 = vmul.f32 1.0, %v975
  %v977 = vtanh.pop %v957
  %v978 = vmul.f32 %v976, %v929
  %980 = vrot.lane.b32.xlu0 %v977, 32
  %v981 = vpop.permute.xlu0 %980
  %v983 = vmul.f32 %v976, %v981
  %985 = vrot.lane.b32.xlu0 %v983, 32
  %v986 = vpop.permute.xlu0 %985
  %v988 = vadd.f32 %v978, %v986
  %v989 = vtanh.pop %v988
  %991 = vrot.lane.b32.xlu0 %v989, 32
  %v992 = vpop.permute.xlu0 %991
  %v994 = vmul.f32 %v976, %v992
  %v995 = vld [vmem:[%s405] sm:$0xff]
  %v996 = vpack.c.bf16 %v994, %v994
  %998 = vrot.lane.b32.xlu0 %v996, 64
  %v999 = vpop.permute.xlu0 %998
  %v1001 = vsel %vm85, %v999, 0
  %1003 = vmatpush.bf16.msra.mxu0 0
  %1004 = vmatpush.bf16.msra.mxu0 0
  %1005 = vmatpush.bf16.msra.mxu0 0
  %1006 = vmatpush.bf16.msra.mxu0 0
  %1007 = vmatpush.bf16.msra.mxu0 0
  %1008 = vmatpush.bf16.msra.mxu0 0
  %1009 = vmatpush.bf16.msra.mxu0 %v764
  %1010 = vmatpush.bf16.msra.mxu0 %v763
  %1011 = vmatmul.bf16.gmra.mxu0 %v1001
  %v1012 = vpop.f32.mrf.mxu0
  %v1013 = vadd.f32 0.0, %v1012
  %v1014 = vpop.f32.mrf.mxu0
  %1015 = vdwg.mxu0
  %v1016 = vadd.f32 %v995, %v1013
  %v1017 = vxor.u32 %v1016, 2147483648
  %v1018 = vmul.f32 %v1017, 1.442695
  %v1019 = vpow.pop %v1018
  %v1020 = vadd.f32 %v1019, 1.0
  %v1021 = vrcp.pop %v1020
  %v1022 = vmul.f32 %v1020, %v1021
  %v1023 = vsub.f32 1.0, %v1022
  %v1024 = vmul.f32 %v1021, %v1023
  %v1025 = vadd.f32 %v1021, %v1024
  %vm1026 = vweird.f32 %v1020
  %vm1027 = vweird.f32 %v1021
  %vm1028 = vmor %vm1026, %vm1027
  %v1029 = vsel %vm1028, %v1021, %v1025
  %v1030 = vand.u32 2147483647, %v1020
  %vm1031 = vcmp.eq.f32.partialorder %v1030, 8.507059e+37
  %v1032 = vand.u32 %v1020, 2147483648
  %v1033 = vor.u32 1.1754944e-38, %v1032
  %v1034 = vsel %vm1031, %v1033, %v1029
  %v1035 = vmul.f32 1.0, %v1034
  %v1036 = vtanh.pop %v1016
  %v1037 = vmul.f32 %v1035, %v988
  %1039 = vrot.lane.b32.xlu0 %v1036, 32
  %v1040 = vpop.permute.xlu0 %1039
  %v1042 = vmul.f32 %v1035, %v1040
  %1044 = vrot.lane.b32.xlu0 %v1042, 32
  %v1045 = vpop.permute.xlu0 %1044
  %v1047 = vadd.f32 %v1037, %v1045
  %v1048 = vtanh.pop %v1047
  %1050 = vrot.lane.b32.xlu0 %v1048, 32
  %v1051 = vpop.permute.xlu0 %1050
  %v1053 = vmul.f32 %v1035, %v1051
  %v1054 = vld [vmem:[%s471] sm:$0xff]
  %v1055 = vpack.c.bf16 %v1053, %v1053
  %1057 = vrot.lane.b32.xlu0 %v1055, 64
  %v1058 = vpop.permute.xlu0 %1057
  %v1060 = vsel %vm85, %v1058, 0
  %1062 = vmatpush.bf16.msra.mxu0 0
  %1063 = vmatpush.bf16.msra.mxu0 0
  %1064 = vmatpush.bf16.msra.mxu0 0
  %1065 = vmatpush.bf16.msra.mxu0 0
  %1066 = vmatpush.bf16.msra.mxu0 0
  %1067 = vmatpush.bf16.msra.mxu0 0
  %1068 = vmatpush.bf16.msra.mxu0 %v764
  %1069 = vmatpush.bf16.msra.mxu0 %v763
  %1070 = vmatmul.bf16.gmra.mxu0 %v1060
  %v1071 = vpop.f32.mrf.mxu0
  %v1072 = vadd.f32 0.0, %v1071
  %v1073 = vpop.f32.mrf.mxu0
  %1074 = vdwg.mxu0
  %v1075 = vadd.f32 %v1054, %v1072
  %v1076 = vxor.u32 %v1075, 2147483648
  %v1077 = vmul.f32 %v1076, 1.442695
  %v1078 = vpow.pop %v1077
  %v1079 = vadd.f32 %v1078, 1.0
  %v1080 = vrcp.pop %v1079
  %v1081 = vmul.f32 %v1079, %v1080
  %v1082 = vsub.f32 1.0, %v1081
  %v1083 = vmul.f32 %v1080, %v1082
  %v1084 = vadd.f32 %v1080, %v1083
  %vm1085 = vweird.f32 %v1079
  %vm1086 = vweird.f32 %v1080
  %vm1087 = vmor %vm1085, %vm1086
  %v1088 = vsel %vm1087, %v1080, %v1084
  %v1089 = vand.u32 2147483647, %v1079
  %vm1090 = vcmp.eq.f32.partialorder %v1089, 8.507059e+37
  %v1091 = vand.u32 %v1079, 2147483648
  %v1092 = vor.u32 1.1754944e-38, %v1091
  %v1093 = vsel %vm1090, %v1092, %v1088
  %v1094 = vmul.f32 1.0, %v1093
  %v1095 = vtanh.pop %v1075
  %v1096 = vmul.f32 %v1094, %v1047
  %1098 = vrot.lane.b32.xlu0 %v1095, 32
  %v1099 = vpop.permute.xlu0 %1098
  %v1101 = vmul.f32 %v1094, %v1099
  %1103 = vrot.lane.b32.xlu0 %v1101, 32
  %v1104 = vpop.permute.xlu0 %1103
  %v1106 = vadd.f32 %v1096, %v1104
  %v1107 = vtanh.pop %v1106
  %1109 = vrot.lane.b32.xlu0 %v1107, 32
  %v1110 = vpop.permute.xlu0 %1109
  %v1112 = vmul.f32 %v1094, %v1110
  %v1113 = vld [vmem:[%s537] sm:$0xff]
  %v1114 = vpack.c.bf16 %v1112, %v1112
  %1116 = vrot.lane.b32.xlu0 %v1114, 64
  %v1117 = vpop.permute.xlu0 %1116
  %v1119 = vsel %vm85, %v1117, 0
  %1121 = vmatpush.bf16.msra.mxu0 0
  %1122 = vmatpush.bf16.msra.mxu0 0
  %1123 = vmatpush.bf16.msra.mxu0 0
  %1124 = vmatpush.bf16.msra.mxu0 0
  %1125 = vmatpush.bf16.msra.mxu0 0
  %1126 = vmatpush.bf16.msra.mxu0 0
  %1127 = vmatpush.bf16.msra.mxu0 %v764
  %1128 = vmatpush.bf16.msra.mxu0 %v763
  %1129 = vmatmul.bf16.gmra.mxu0 %v1119
  %v1130 = vpop.f32.mrf.mxu0
  %v1131 = vadd.f32 0.0, %v1130
  %v1132 = vpop.f32.mrf.mxu0
  %1133 = vdwg.mxu0
  %v1134 = vadd.f32 %v1113, %v1131
  %v1135 = vxor.u32 %v1134, 2147483648
  %v1136 = vmul.f32 %v1135, 1.442695
  %v1137 = vpow.pop %v1136
  %v1138 = vadd.f32 %v1137, 1.0
  %v1139 = vrcp.pop %v1138
  %v1140 = vmul.f32 %v1138, %v1139
  %v1141 = vsub.f32 1.0, %v1140
  %v1142 = vmul.f32 %v1139, %v1141
  %v1143 = vadd.f32 %v1139, %v1142
  %vm1144 = vweird.f32 %v1138
  %vm1145 = vweird.f32 %v1139
  %vm1146 = vmor %vm1144, %vm1145
  %v1147 = vsel %vm1146, %v1139, %v1143
  %v1148 = vand.u32 2147483647, %v1138
  %vm1149 = vcmp.eq.f32.partialorder %v1148, 8.507059e+37
  %v1150 = vand.u32 %v1138, 2147483648
  %v1151 = vor.u32 1.1754944e-38, %v1150
  %v1152 = vsel %vm1149, %v1151, %v1147
  %v1153 = vmul.f32 1.0, %v1152
  %v1154 = vtanh.pop %v1134
  %v1155 = vmul.f32 %v1153, %v1106
  %1157 = vrot.lane.b32.xlu0 %v1154, 32
  %v1158 = vpop.permute.xlu0 %1157
  %v1160 = vmul.f32 %v1153, %v1158
  %1162 = vrot.lane.b32.xlu0 %v1160, 32
  %v1163 = vpop.permute.xlu0 %1162
  %v1165 = vadd.f32 %v1155, %v1163
  %v1166 = vtanh.pop %v1165
  %1168 = vrot.lane.b32.xlu0 %v1166, 32
  %v1169 = vpop.permute.xlu0 %1168
  %v1171 = vmul.f32 %v1153, %v1169
  %v1172 = vld [vmem:[%s603] sm:$0xff]
  %v1173 = vpack.c.bf16 %v1171, %v1171
  %1175 = vrot.lane.b32.xlu0 %v1173, 64
  %v1176 = vpop.permute.xlu0 %1175
  %v1178 = vsel %vm85, %v1176, 0
  %1180 = vmatpush.bf16.msra.mxu0 0
  %1181 = vmatpush.bf16.msra.mxu0 0
  %1182 = vmatpush.bf16.msra.mxu0 0
  %1183 = vmatpush.bf16.msra.mxu0 0
  %1184 = vmatpush.bf16.msra.mxu0 0
  %1185 = vmatpush.bf16.msra.mxu0 0
  %1186 = vmatpush.bf16.msra.mxu0 %v764
  %1187 = vmatpush.bf16.msra.mxu0 %v763
  %1188 = vmatmul.bf16.gmra.mxu0 %v1178
  %v1189 = vpop.f32.mrf.mxu0
  %v1190 = vadd.f32 0.0, %v1189
  %v1191 = vpop.f32.mrf.mxu0
  %1192 = vdwg.mxu0
  %v1193 = vadd.f32 %v1172, %v1190
  %v1194 = vxor.u32 %v1193, 2147483648
  %v1195 = vmul.f32 %v1194, 1.442695
  %v1196 = vpow.pop %v1195
  %v1197 = vadd.f32 %v1196, 1.0
  %v1198 = vrcp.pop %v1197
  %v1199 = vmul.f32 %v1197, %v1198
  %v1200 = vsub.f32 1.0, %v1199
  %v1201 = vmul.f32 %v1198, %v1200
  %v1202 = vadd.f32 %v1198, %v1201
  %vm1203 = vweird.f32 %v1197
  %vm1204 = vweird.f32 %v1198
  %vm1205 = vmor %vm1203, %vm1204
  %v1206 = vsel %vm1205, %v1198, %v1202
  %v1207 = vand.u32 2147483647, %v1197
  %vm1208 = vcmp.eq.f32.partialorder %v1207, 8.507059e+37
  %v1209 = vand.u32 %v1197, 2147483648
  %v1210 = vor.u32 1.1754944e-38, %v1209
  %v1211 = vsel %vm1208, %v1210, %v1206
  %v1212 = vmul.f32 1.0, %v1211
  %v1213 = vtanh.pop %v1193
  %v1214 = vmul.f32 %v1212, %v1165
  %1216 = vrot.lane.b32.xlu0 %v1213, 32
  %v1217 = vpop.permute.xlu0 %1216
  %v1219 = vmul.f32 %v1212, %v1217
  %1221 = vrot.lane.b32.xlu0 %v1219, 32
  %v1222 = vpop.permute.xlu0 %1221
  %v1224 = vadd.f32 %v1214, %v1222
  %v1225 = vtanh.pop %v1224
  %1227 = vrot.lane.b32.xlu0 %v1225, 32
  %v1228 = vpop.permute.xlu0 %1227
  %v1230 = vmul.f32 %v1212, %v1228
  %v1231 = vpack.c.bf16 %v1230, %v1230
  %v1232 = vld [vmem:[%s7] sm:$0xf]
  %v1233 = vld [vmem:[%s7 + $0x4] sm:$0xf]
  %v1234 = vld [vmem:[%s7 + $0x8] sm:$0xf]
  %v1235 = vld [vmem:[%s7 + $0xc] sm:$0xf]
  %v1236 = vld [vmem:[%s8] sm:$0x1]
  %v1238 = vperm.slane %v1236, 0
  %1241 = vrot.lane.b32.xlu0 %v1231, 64
  %v1242 = vpop.permute.xlu0 %1241
  %v1247 = vunpack.c.l.b16 %v1232
  %v1248 = vunpack.c.l.b16 %v1233
  %v1249 = vunpack.c.l.b16 %v1234
  %v1250 = vunpack.c.l.b16 %v1235
  %v1251 = vpack.c.b16 %v1248, %v1247
  %v1252 = vpack.c.b16 %v1250, %v1249
  %v1256 = vsel %vm85, %v1242, 0
  %1258 = vmatpush.bf16.msra.mxu0 0
  %1259 = vmatpush.bf16.msra.mxu0 0
  %1260 = vmatpush.bf16.msra.mxu0 0
  %1261 = vmatpush.bf16.msra.mxu0 0
  %1262 = vmatpush.bf16.msra.mxu0 0
  %1263 = vmatpush.bf16.msra.mxu0 0
  %1264 = vmatpush.bf16.msra.mxu0 %v1252
  %1265 = vmatpush.bf16.msra.mxu0 %v1251
  %1266 = vmatmul.bf16.gmra.mxu0 %v1256
  %v1267 = vpop.f32.mrf.mxu0
  %v1268 = vadd.f32 %v1238, %v1267
  %v1269 = vpop.f32.mrf.mxu0
  %1270 = vdwg.mxu0
  %1271 = vst [vmem:[%s9] sm:$0xff] %v1268
  // Predicated region
  $region38: #{rnn_forward.1} parent=0 // pred_check
    _
  $region39: #{rnn_forward.1} parent=0 // pred_check_branch
    %1273 = sbr.rel (0) target = $region41
  $region40: #{rnn_forward.1} parent=0 // pred_region
    _
  $region41: #{rnn_forward.1} parent=0 // pred_fallthru
    _
  // Predicated region
  $region42: #{rnn_forward.1} parent=0 // pred_check
    _
  $region43: #{rnn_forward.1} parent=0 // pred_check_branch
    %1275 = sbr.rel (0) target = $region45
  $region44: #{rnn_forward.1} parent=0 // pred_region
    _
  $region45: #{rnn_forward.1} parent=0 // pred_fallthru
    _

</llo_original>
